<compile_context>
chip_gen: v6e
topology: v6e:2x2x1
jax: 0.10.0
libtpu: 0.0.40
codegen_flags: <defaults>
</compile_context>

<pallas_src>
import functools

import jax
import jax.numpy as jnp
from jax import lax
from jax.experimental import pallas as pl
from jax.experimental.pallas import tpu as pltpu


def _round_up(x, m):
    return (x + m - 1) // m * m


def _conv_sum_kernel(p_ref, w_ref, y_ref, sum_ref):
    # p_ref  : (TM, Kp)   im2col patch tile (K = KH*KW*Cin padded to 128 lanes)
    # w_ref  : (Kp, Cp)   flattened weights (resident, constant block index)
    # y_ref  : (TM, Cp)   conv output tile (lane-dense, Cp = 128)
    # sum_ref: (1,  Cp)   per-channel running sum (resident accumulator across the grid)
    i = pl.program_id(0)
    y = jnp.dot(p_ref[...], w_ref[...], preferred_element_type=jnp.float32)
    y_ref[...] = y

    @pl.when(i == 0)
    def _():
        sum_ref[...] = jnp.zeros_like(sum_ref)

    sum_ref[...] += jnp.sum(y, axis=0, keepdims=True)


def _bn_apply_kernel(y_ref, mean_ref, gamma_ref, beta_ref, o_ref, ssq_ref,
                     *, m_total, tm, eps):
    # Grid = (2, n_tiles): phase 0 accumulates sum((y-mean)^2), phase 1 applies BN + ReLU.
    ph = pl.program_id(0)
    i = pl.program_id(1)

    @pl.when(jnp.logical_and(ph == 0, i == 0))
    def _():
        ssq_ref[...] = jnp.zeros_like(ssq_ref)

    y = y_ref[...]
    mean = mean_ref[...]

    @pl.when(ph == 0)
    def _():
        d = y - mean
        # Mask rows padded past the true M so they don't contaminate the variance.
        rows = lax.broadcasted_iota(jnp.int32, d.shape, 0) + i * tm
        d2 = jnp.where(rows < m_total, d * d, 0.0)
        ssq_ref[...] += jnp.sum(d2, axis=0, keepdims=True)

    @pl.when(ph == 1)
    def _():
        var = ssq_ref[...] * (1.0 / m_total)          # biased variance (PyTorch BN forward)
        inv = lax.rsqrt(var + eps)
        o = (y - mean) * (inv * gamma_ref[...]) + beta_ref[...]
        o_ref[...] = jnp.maximum(o, 0.0).astype(o_ref.dtype)


@functools.partial(jax.jit, static_argnames=("padding",))
def conv_block(x_nchw, w_oihw, bias, gamma, beta, padding=1):
    """ConvBlock forward. x_nchw: (N, Cin, H, W); w_oihw: (Cout, Cin, KH, KW); stride=1."""
    N, Cin, H, W = x_nchw.shape
    Cout, _, KH, KW = w_oihw.shape
    H_out = H + 2 * padding - KH + 1
    W_out = W + 2 * padding - KW + 1

    M = N * H_out * W_out
    K = KH * KW * Cin
    Kp = _round_up(K, 128)          # contraction dim packed/padded to full 128-lane width
    Cp = _round_up(Cout, 128)       # lane-dense output channels
    TM = 256 if M >= 256 else _round_up(M, 8)
    M_pad = _round_up(M, TM)
    n_tiles = M_pad // TM

    # --- wrapper-side repack: NCHW -> im2col patch matrix (M_pad, Kp), weights (Kp, Cp) ---
    x_nhwc = jnp.transpose(x_nchw, (0, 2, 3, 1)).astype(jnp.float32)
    x_p = jnp.pad(x_nhwc, ((0, 0), (padding, padding), (padding, padding), (0, 0)))
    patches = jnp.concatenate(
        [x_p[:, kh:kh + H_out, kw:kw + W_out, :] for kh in range(KH) for kw in range(KW)],
        axis=-1,
    ).reshape(M, K)
    patches = jnp.pad(patches, ((0, M_pad - M), (0, Kp - K)))

    w_mat = jnp.transpose(w_oihw, (2, 3, 1, 0)).reshape(K, Cout).astype(jnp.float32)
    w_mat = jnp.pad(w_mat, ((0, Kp - K), (0, Cp - Cout)))

    gamma_p = jnp.pad(gamma.astype(jnp.float32), (0, Cp - Cout)).reshape(1, Cp)
    beta_p = jnp.pad(beta.astype(jnp.float32), (0, Cp - Cout)).reshape(1, Cp)
    del bias  # exactly cancelled by the batch-mean subtraction in training-mode BN

    # --- call 1: tiled fused-tap matmul + per-channel sum -------------------------------
    conv_out, ch_sum = pl.pallas_call(
        _conv_sum_kernel,
        out_shape=(jax.ShapeDtypeStruct((M_pad, Cp), jnp.float32),
                   jax.ShapeDtypeStruct((1, Cp), jnp.float32)),
        grid=(n_tiles,),
        in_specs=[pl.BlockSpec((TM, Kp), lambda i: (i, 0)),
                  pl.BlockSpec((Kp, Cp), lambda i: (0, 0))],
        out_specs=(pl.BlockSpec((TM, Cp), lambda i: (i, 0)),
                   pl.BlockSpec((1, Cp), lambda i: (0, 0))),
        compiler_params=pltpu.CompilerParams(
            dimension_semantics=("arbitrary",),            # channel-sum carried across tiles
            vmem_limit_bytes=32 * 1024 * 1024),
    )(patches, w_mat)

    mean = ch_sum * (1.0 / M)  # padded channels have sum 0 -> mean 0 (no NaN downstream)

    # --- call 2: two-pass variance + normalize + ReLU -----------------------------------
    out2d = pl.pallas_call(
        functools.partial(_bn_apply_kernel, m_total=M, tm=TM, eps=1e-5),
        out_shape=jax.ShapeDtypeStruct((M_pad, Cp), x_nchw.dtype),
        grid=(2, n_tiles),
        in_specs=[pl.BlockSpec((TM, Cp), lambda p, i: (i, 0)),
                  pl.BlockSpec((1, Cp), lambda p, i: (0, 0)),
                  pl.BlockSpec((1, Cp), lambda p, i: (0, 0)),
                  pl.BlockSpec((1, Cp), lambda p, i: (0, 0))],
        # During phase 0 the output block index is pinned to 0 (never written), so no
        # garbage writebacks happen; phase 1 visits each output tile exactly once.
        out_specs=pl.BlockSpec((TM, Cp), lambda p, i: (i * p, 0)),
        scratch_shapes=[pltpu.VMEM((1, Cp), jnp.float32)],
        compiler_params=pltpu.CompilerParams(
            dimension_semantics=("arbitrary", "arbitrary"),
            vmem_limit_bytes=32 * 1024 * 1024),
    )(conv_out, mean, gamma_p, beta_p)

    out = out2d[:M, :Cout].reshape(N, H_out, W_out, Cout)
    return jnp.transpose(out, (0, 3, 1, 2))


def _reference(x_nchw, w_oihw, bias, gamma, beta, padding=1):
    y = lax.conv_general_dilated(
        x_nchw.astype(jnp.float32), w_oihw.astype(jnp.float32),
        window_strides=(1, 1), padding=[(padding, padding), (padding, padding)],
        dimension_numbers=("NCHW", "OIHW", "NCHW"),
    ) + bias.reshape(1, -1, 1, 1)
    mean = jnp.mean(y, axis=(0, 2, 3), keepdims=True)
    var = jnp.mean((y - mean) ** 2, axis=(0, 2, 3), keepdims=True)
    y = (y - mean) * lax.rsqrt(var + 1e-5)
    y = y * gamma.reshape(1, -1, 1, 1) + beta.reshape(1, -1, 1, 1)
    return jnp.maximum(y, 0.0)


if __name__ == "__main__":
    # Small synthetic instance: in_ch=4, out_ch=8, kernel_size=3, padding=1.
    N, Cin, H, W = 2, 4, 16, 16
    Cout, KH, KW = 8, 3, 3

    key = jax.random.PRNGKey(0)
    kx, kw, kb, kg, kbeta = jax.random.split(key, 5)
    x = jax.random.normal(kx, (N, Cin, H, W), dtype=jnp.float32)
    w = jax.random.normal(kw, (Cout, Cin, KH, KW), dtype=jnp.float32) * 0.1
    b = jax.random.normal(kb, (Cout,), dtype=jnp.float32) * 0.1
    gamma = 1.0 + 0.1 * jax.random.normal(kg, (Cout,), dtype=jnp.float32)
    beta = 0.1 * jax.random.normal(kbeta, (Cout,), dtype=jnp.float32)

    out = conv_block(x, w, b, gamma, beta, padding=1)
    out = jax.block_until_ready(out)

    ref = _reference(x, w, b, gamma, beta, padding=1)
    assert out.shape == (N, Cout, H, W), out.shape
    assert jnp.allclose(out, ref, atol=1e-4, rtol=1e-4), float(jnp.max(jnp.abs(out - ref)))

    print("KERNEL_OK")
</pallas_src>

<mosaic_0001>
module attributes {stable_mosaic.version = 11 : i64} {
  func.func @_bn_apply_kernel(%arg0: i32, %arg1: i32, %arg2: memref<256x128xf32, #tpu.memory_space<vmem>>, %arg3: memref<1x128xf32, #tpu.memory_space<vmem>>, %arg4: memref<1x128xf32, #tpu.memory_space<vmem>>, %arg5: memref<1x128xf32, #tpu.memory_space<vmem>>, %arg6: memref<256x128xf32, #tpu.memory_space<vmem>>, %arg7: memref<1x128xf32, #tpu.memory_space<vmem>>) attributes {dimension_semantics = [#tpu.dimension_semantics<arbitrary>, #tpu.dimension_semantics<arbitrary>], iteration_bounds = array<i64: 2, 2>, scalar_prefetch = 0 : i64, scratch_operands = 1 : i64, tpu.core_type = #tpu.core_type<tc>, window_params = [{transform_indices = @transform_0, window_bounds = array<i64: 256, 128>}, {pipeline_mode = #tpu.pipeline_mode<synchronous>, transform_indices = @transform_1, window_bounds = array<i64: 1, 128>}, {pipeline_mode = #tpu.pipeline_mode<synchronous>, transform_indices = @transform_2, window_bounds = array<i64: 1, 128>}, {pipeline_mode = #tpu.pipeline_mode<synchronous>, transform_indices = @transform_3, window_bounds = array<i64: 1, 128>}, {transform_indices = @transform_4, window_bounds = array<i64: 256, 128>}]} {
    %c0_i32 = arith.constant 0 : i32
    %0 = arith.cmpi eq, %arg0, %c0_i32 : i32
    %c0_i32_0 = arith.constant 0 : i32
    %1 = arith.cmpi eq, %arg1, %c0_i32_0 : i32
    %2 = arith.andi %0, %1 : i1
    %3 = arith.extui %2 : i1 to i32
    %c0_i32_1 = arith.constant 0 : i32
    %4 = arith.cmpi ne, %3, %c0_i32_1 : i32
    scf.if %4 {
      %cst = arith.constant 0.000000e+00 : f32
      %13 = vector.broadcast %cst : f32 to vector<1x128xf32>
      %c0_8 = arith.constant 0 : index
      %c0_9 = arith.constant 0 : index
      %14 = vector.load %arg7[%c0_8, %c0_9] : memref<1x128xf32, #tpu.memory_space<vmem>>, vector<1x128xf32>
      tpu.vector_store %arg7[%c0_8, %c0_9], %13 {strides = array<i32>} : memref<1x128xf32, #tpu.memory_space<vmem>>, vector<1x128xf32>,
    } else {
    }
    %c0 = arith.constant 0 : index
    %c0_2 = arith.constant 0 : index
    %5 = vector.load %arg2[%c0, %c0_2] : memref<256x128xf32, #tpu.memory_space<vmem>>, vector<256x128xf32>
    %c0_3 = arith.constant 0 : index
    %c0_4 = arith.constant 0 : index
    %6 = vector.load %arg3[%c0_3, %c0_4] : memref<1x128xf32, #tpu.memory_space<vmem>>, vector<1x128xf32>
    %c0_i32_5 = arith.constant 0 : i32
    %7 = arith.cmpi eq, %arg0, %c0_i32_5 : i32
    %8 = arith.extui %7 : i1 to i32
    %c0_i32_6 = arith.constant 0 : i32
    %9 = arith.cmpi ne, %8, %c0_i32_6 : i32
    scf.if %9 {
      %13 = vector.broadcast %6 : vector<1x128xf32> to vector<256x128xf32>
      %14 = arith.subf %5, %13 : vector<256x128xf32>
      %15 = tpu.iota {dimensions = array<i32: 0>} : vector<256x128xi32>
      %c256_i32 = arith.constant 256 : i32
      %16 = arith.muli %arg1, %c256_i32 : i32
      %17 = vector.broadcast %16 : i32 to vector<256x128xi32>
      %18 = arith.addi %15, %17 : vector<256x128xi32>
      %c512_i32 = arith.constant 512 : i32
      %19 = vector.broadcast %c512_i32 : i32 to vector<256x128xi32>
      %20 = arith.cmpi slt, %18, %19 : vector<256x128xi32>
      %21 = arith.mulf %14, %14 : vector<256x128xf32>
      %cst = arith.constant 0.000000e+00 : f32
      %22 = vector.broadcast %cst : f32 to vector<256x128xf32>
      %23 = arith.select %20, %21, %22 : vector<256x128xi1>, vector<256x128xf32>
      %c0_8 = arith.constant 0 : index
      %c0_9 = arith.constant 0 : index
      %24 = vector.load %arg7[%c0_8, %c0_9] : memref<1x128xf32, #tpu.memory_space<vmem>>, vector<1x128xf32>
      %cst_10 = arith.constant dense<0.000000e+00> : vector<128xf32>
      %25 = vector.multi_reduction <add>, %23, %cst_10 [0] : vector<256x128xf32> to vector<128xf32>
      %26 = vector.shape_cast %25 : vector<128xf32> to vector<1x128xf32>
      %27 = arith.addf %24, %26 : vector<1x128xf32>
      %c0_11 = arith.constant 0 : index
      %c0_12 = arith.constant 0 : index
      %28 = vector.load %arg7[%c0_11, %c0_12] : memref<1x128xf32, #tpu.memory_space<vmem>>, vector<1x128xf32>
      tpu.vector_store %arg7[%c0_11, %c0_12], %27 {strides = array<i32>} : memref<1x128xf32, #tpu.memory_space<vmem>>, vector<1x128xf32>,
    } else {
    }
    %c1_i32 = arith.constant 1 : i32
    %10 = arith.cmpi eq, %arg0, %c1_i32 : i32
    %11 = arith.extui %10 : i1 to i32
    %c0_i32_7 = arith.constant 0 : i32
    %12 = arith.cmpi ne, %11, %c0_i32_7 : i32
    scf.if %12 {
      %c0_8 = arith.constant 0 : index
      %c0_9 = arith.constant 0 : index
      %13 = vector.load %arg7[%c0_8, %c0_9] : memref<1x128xf32, #tpu.memory_space<vmem>>, vector<1x128xf32>
      %cst = arith.constant 0.001953125 : f32
      %14 = vector.broadcast %cst : f32 to vector<1x128xf32>
      %15 = arith.mulf %13, %14 : vector<1x128xf32>
      %cst_10 = arith.constant 9.99999974E-6 : f32
      %16 = vector.broadcast %cst_10 : f32 to vector<1x128xf32>
      %17 = arith.addf %15, %16 : vector<1x128xf32>
      %18 = math.rsqrt %17 : vector<1x128xf32>
      %19 = vector.broadcast %6 : vector<1x128xf32> to vector<256x128xf32>
      %20 = arith.subf %5, %19 : vector<256x128xf32>
      %c0_11 = arith.constant 0 : index
      %c0_12 = arith.constant 0 : index
      %21 = vector.load %arg4[%c0_11, %c0_12] : memref<1x128xf32, #tpu.memory_space<vmem>>, vector<1x128xf32>
      %22 = arith.mulf %18, %21 : vector<1x128xf32>
      %23 = vector.broadcast %22 : vector<1x128xf32> to vector<256x128xf32>
      %24 = arith.mulf %20, %23 : vector<256x128xf32>
      %c0_13 = arith.constant 0 : index
      %c0_14 = arith.constant 0 : index
      %25 = vector.load %arg5[%c0_13, %c0_14] : memref<1x128xf32, #tpu.memory_space<vmem>>, vector<1x128xf32>
      %26 = vector.broadcast %25 : vector<1x128xf32> to vector<256x128xf32>
      %27 = arith.addf %24, %26 : vector<256x128xf32>
      %cst_15 = arith.constant 0.000000e+00 : f32
      %28 = vector.broadcast %cst_15 : f32 to vector<256x128xf32>
      %29 = arith.maximumf %27, %28 : vector<256x128xf32>
      %c0_16 = arith.constant 0 : index
      %c0_17 = arith.constant 0 : index
      %30 = vector.load %arg6[%c0_16, %c0_17] : memref<256x128xf32, #tpu.memory_space<vmem>>, vector<256x128xf32>
      tpu.vector_store %arg6[%c0_16, %c0_17], %29 {strides = array<i32>} : memref<256x128xf32, #tpu.memory_space<vmem>>, vector<256x128xf32>,
    } else {
    }
    return
  }
  func.func @transform_0(%arg0: i32, %arg1: i32) -> (i32, i32) {
    %c0_i32 = arith.constant 0 : i32
    %c0_i32_0 = arith.constant 0 : i32
    return %arg1, %c0_i32 : i32, i32
  }
  func.func @transform_1(%arg0: i32, %arg1: i32) -> (i32, i32) {
    %c0_i32 = arith.constant 0 : i32
    %c0_i32_0 = arith.constant 0 : i32
    %c0_i32_1 = arith.constant 0 : i32
    return %c0_i32, %c0_i32_0 : i32, i32
  }
  func.func @transform_2(%arg0: i32, %arg1: i32) -> (i32, i32) {
    %c0_i32 = arith.constant 0 : i32
    %c0_i32_0 = arith.constant 0 : i32
    %c0_i32_1 = arith.constant 0 : i32
    return %c0_i32, %c0_i32_0 : i32, i32
  }
  func.func @transform_3(%arg0: i32, %arg1: i32) -> (i32, i32) {
    %c0_i32 = arith.constant 0 : i32
    %c0_i32_0 = arith.constant 0 : i32
    %c0_i32_1 = arith.constant 0 : i32
    return %c0_i32, %c0_i32_0 : i32, i32
  }
  func.func @transform_4(%arg0: i32, %arg1: i32) -> (i32, i32) {
    %0 = arith.muli %arg1, %arg0 : i32
    %c0_i32 = arith.constant 0 : i32
    %c0_i32_0 = arith.constant 0 : i32
    return %0, %c0_i32 : i32, i32
  }
}

module attributes {stable_mosaic.version = 11 : i64} {
  func.func @_conv_sum_kernel(%arg0: i32, %arg1: memref<256x128xf32, #tpu.memory_space<vmem>>, %arg2: memref<128x128xf32, #tpu.memory_space<vmem>>, %arg3: memref<256x128xf32, #tpu.memory_space<vmem>>, %arg4: memref<1x128xf32, #tpu.memory_space<vmem>>) attributes {dimension_semantics = [#tpu.dimension_semantics<arbitrary>], iteration_bounds = array<i64: 2>, scalar_prefetch = 0 : i64, scratch_operands = 0 : i64, tpu.core_type = #tpu.core_type<tc>, window_params = [{transform_indices = @transform_0, window_bounds = array<i64: 256, 128>}, {pipeline_mode = #tpu.pipeline_mode<synchronous>, transform_indices = @transform_1, window_bounds = array<i64: 128, 128>}, {transform_indices = @transform_2, window_bounds = array<i64: 256, 128>}, {pipeline_mode = #tpu.pipeline_mode<synchronous>, transform_indices = @transform_3, window_bounds = array<i64: 1, 128>}]} {
    %c0 = arith.constant 0 : index
    %c0_0 = arith.constant 0 : index
    %0 = vector.load %arg1[%c0, %c0_0] : memref<256x128xf32, #tpu.memory_space<vmem>>, vector<256x128xf32>
    %c0_1 = arith.constant 0 : index
    %c0_2 = arith.constant 0 : index
    %1 = vector.load %arg2[%c0_1, %c0_2] : memref<128x128xf32, #tpu.memory_space<vmem>>, vector<128x128xf32>
    %cst = arith.constant dense<0.000000e+00> : vector<256x128xf32>
    %2 = tpu.matmul %0, %1, %cst {dimension_numbers = #tpu.dot_dimension_numbers<[1], [0], [0], [1], [0, 0, 1, 1], [], []>} : vector<256x128xf32>, vector<128x128xf32>, vector<256x128xf32> -> vector<256x128xf32>
    %c0_3 = arith.constant 0 : index
    %c0_4 = arith.constant 0 : index
    %3 = vector.load %arg3[%c0_3, %c0_4] : memref<256x128xf32, #tpu.memory_space<vmem>>, vector<256x128xf32>
    tpu.vector_store %arg3[%c0_3, %c0_4], %2 {strides = array<i32>} : memref<256x128xf32, #tpu.memory_space<vmem>>, vector<256x128xf32>,
    %c0_i32 = arith.constant 0 : i32
    %4 = arith.cmpi eq, %arg0, %c0_i32 : i32
    %5 = arith.extui %4 : i1 to i32
    %c0_i32_5 = arith.constant 0 : i32
    %6 = arith.cmpi ne, %5, %c0_i32_5 : i32
    scf.if %6 {
      %cst_11 = arith.constant 0.000000e+00 : f32
      %12 = vector.broadcast %cst_11 : f32 to vector<1x128xf32>
      %c0_12 = arith.constant 0 : index
      %c0_13 = arith.constant 0 : index
      %13 = vector.load %arg4[%c0_12, %c0_13] : memref<1x128xf32, #tpu.memory_space<vmem>>, vector<1x128xf32>
      tpu.vector_store %arg4[%c0_12, %c0_13], %12 {strides = array<i32>} : memref<1x128xf32, #tpu.memory_space<vmem>>, vector<1x128xf32>,
    } else {
    }
    %c0_6 = arith.constant 0 : index
    %c0_7 = arith.constant 0 : index
    %7 = vector.load %arg4[%c0_6, %c0_7] : memref<1x128xf32, #tpu.memory_space<vmem>>, vector<1x128xf32>
    %cst_8 = arith.constant dense<0.000000e+00> : vector<128xf32>
    %8 = vector.multi_reduction <add>, %2, %cst_8 [0] : vector<256x128xf32> to vector<128xf32>
    %9 = vector.shape_cast %8 : vector<128xf32> to vector<1x128xf32>
    %10 = arith.addf %7, %9 : vector<1x128xf32>
    %c0_9 = arith.constant 0 : index
    %c0_10 = arith.constant 0 : index
    %11 = vector.load %arg4[%c0_9, %c0_10] : memref<1x128xf32, #tpu.memory_space<vmem>>, vector<1x128xf32>
    tpu.vector_store %arg4[%c0_9, %c0_10], %10 {strides = array<i32>} : memref<1x128xf32, #tpu.memory_space<vmem>>, vector<1x128xf32>,
    return
  }
  func.func @transform_0(%arg0: i32) -> (i32, i32) {
    %c0_i32 = arith.constant 0 : i32
    %c0_i32_0 = arith.constant 0 : i32
    return %arg0, %c0_i32 : i32, i32
  }
  func.func @transform_1(%arg0: i32) -> (i32, i32) {
    %c0_i32 = arith.constant 0 : i32
    %c0_i32_0 = arith.constant 0 : i32
    %c0_i32_1 = arith.constant 0 : i32
    return %c0_i32, %c0_i32_0 : i32, i32
  }
  func.func @transform_2(%arg0: i32) -> (i32, i32) {
    %c0_i32 = arith.constant 0 : i32
    %c0_i32_0 = arith.constant 0 : i32
    return %arg0, %c0_i32 : i32, i32
  }
  func.func @transform_3(%arg0: i32) -> (i32, i32) {
    %c0_i32 = arith.constant 0 : i32
    %c0_i32_0 = arith.constant 0 : i32
    %c0_i32_1 = arith.constant 0 : i32
    return %c0_i32, %c0_i32_0 : i32, i32
  }
}

</mosaic_0001>

<llo_original>
// kernel: conv_block.2
$region0: #{conv_block.2}
  #allocation0 [shape = 'u32[]', space=smem, size = 0x4, offset = 0x4, fixed_abs, tag = 'smem constant byte address 0x4 - core index']
  #allocation1 [shape = 'u32[144,128]{1,0:T(1,128)}', space=vmem, size = 0x12000, scoped, tag = 'internal scratch']
  %s0 = inlined_call_operand.vmem [shape: f32[512,128], index: 0, kind: input, shape index: {}]
  %s1 = inlined_call_operand.vmem [shape: f32[128,128], index: 1, kind: input, shape index: {}]
  %s2 = inlined_call_operand.vmem [shape: f32[512,128], index: 2, kind: output, shape index: {0}]
  %s3 = inlined_call_operand.vmem [shape: f32[1,128], index: 3, kind: output, shape index: {1}]
  %4 = xla_tuple %s2, %s3
  %s5 = sld [smem:[#allocation0]]
  $region53: #{conv_block.2} parent=0
    _
  %s7 = ssub.s32 1, %s5
  %s8 = scalar_select 0, %s7, %s5
  loop: start=0, step=1, limit=4
  $region2: #{conv_block.2} parent=0 // loop_pre_header
    _
  $region3: #{conv_block.2} parent=0 // loop_header
    %s10 = sphi 0, %s14
    %p11 = scmp.ge.s32.totalorder %s10, 4
    %s20 = sphi 0, %s22
    %s23 = sphi 0, %s20
    %s24 = sphi 0, %s23
    %s40 = sphi 0, %s24
    %s44 = sphi 0, %s44
    %s46 = sphi 0, %s44
    %s47 = sphi 0, %s46
    %s61 = sphi 0, %s47
    %s67 = sphi 0, %s69
    %s70 = sphi 0, %s67
    %s71 = sphi 0, %s70
    %s87 = sphi 0, %s71
    %s91 = sphi 0, %s91
    %s93 = sphi 0, %s91
    %s94 = sphi 0, %s93
    %s108 = sphi 0, %s94
  $region4: #{conv_block.2} parent=0 // loop_header_branch
    %13 = sbr.rel (%p11) target = $region8
  $region5: #{conv_block.2} parent=0 // loop_body
    %s15 = ssub.s32 %s10, 1
    %s16 = ssub.s32 %s10, 2
    %s17 = sadd.s32 %s10, 1
    %s18 = ssub.s32 %s10, %s17
    %p19 = scmp.eq.s32.totalorder %s18, 0
    %s21 = sadd.s32 %s20, 1
    %s22 = scalar_select %p19, %s20, %s21
    %p25 = pneg %p19
    %p26 = scmp.eq.s32.totalorder %s10, 1
    %p27 = por %p25, %p26
    %p28 = scmp.ne.s32.totalorder %s20, %s23
    %p29 = scmp.eq.s32.totalorder %s10, 0
    %p30 = por %p28, %p29
    %p31 = scmp.ne.s32.totalorder %s20, %s23
    %p32 = scmp.eq.s32.totalorder %s15, 1
    %p33 = por %p31, %p32
    %p34 = scmp.ne.s32.totalorder %s23, %s24
    %p35 = scmp.eq.s32.totalorder %s15, 0
    %p36 = por %p34, %p35
    %p37 = scmp.ne.s32.totalorder %s23, %s24
    %p38 = scmp.eq.s32.totalorder %s16, 1
    %p39 = por %p37, %p38
    %p41 = scmp.ne.s32.totalorder %s24, %s40
    %p42 = scmp.eq.s32.totalorder %s16, 0
    %p43 = por %p41, %p42
    %s45 = sadd.s32 %s44, 1
    %p48 = scmp.eq.s32.totalorder %s10, 1
    %p49 = scmp.ne.s32.totalorder %s44, %s46
    %p50 = scmp.eq.s32.totalorder %s10, 0
    %p51 = por %p49, %p50
    %p52 = scmp.ne.s32.totalorder %s44, %s46
    %p53 = scmp.eq.s32.totalorder %s15, 1
    %p54 = por %p52, %p53
    %p55 = scmp.ne.s32.totalorder %s46, %s47
    %p56 = scmp.eq.s32.totalorder %s15, 0
    %p57 = por %p55, %p56
    %p58 = scmp.ne.s32.totalorder %s46, %s47
    %p59 = scmp.eq.s32.totalorder %s16, 1
    %p60 = por %p58, %p59
    %p62 = scmp.ne.s32.totalorder %s47, %s61
    %p63 = scmp.eq.s32.totalorder %s16, 0
    %p64 = por %p62, %p63
    %s65 = ssub.s32 %s10, %s17
    %p66 = scmp.eq.s32.totalorder %s65, 0
    %s68 = sadd.s32 %s67, 1
    %s69 = scalar_select %p66, %s67, %s68
    %p72 = pneg %p66
    %p73 = scmp.eq.s32.totalorder %s10, 1
    %p74 = por %p72, %p73
    %p75 = scmp.ne.s32.totalorder %s67, %s70
    %p76 = scmp.eq.s32.totalorder %s10, 0
    %p77 = por %p75, %p76
    %p78 = scmp.ne.s32.totalorder %s67, %s70
    %p79 = scmp.eq.s32.totalorder %s15, 1
    %p80 = por %p78, %p79
    %p81 = scmp.ne.s32.totalorder %s70, %s71
    %p82 = scmp.eq.s32.totalorder %s15, 0
    %p83 = por %p81, %p82
    %p84 = scmp.ne.s32.totalorder %s70, %s71
    %p85 = scmp.eq.s32.totalorder %s16, 1
    %p86 = por %p84, %p85
    %p88 = scmp.ne.s32.totalorder %s71, %s87
    %p89 = scmp.eq.s32.totalorder %s16, 0
    %p90 = por %p88, %p89
    %s92 = sadd.s32 %s91, 1
    %p95 = scmp.eq.s32.totalorder %s10, 1
    %p96 = scmp.ne.s32.totalorder %s91, %s93
    %p97 = scmp.eq.s32.totalorder %s10, 0
    %p98 = por %p96, %p97
    %p99 = scmp.ne.s32.totalorder %s91, %s93
    %p100 = scmp.eq.s32.totalorder %s15, 1
    %p101 = por %p99, %p100
    %p102 = scmp.ne.s32.totalorder %s93, %s94
    %p103 = scmp.eq.s32.totalorder %s15, 0
    %p104 = por %p102, %p103
    %p105 = scmp.ne.s32.totalorder %s93, %s94
    %p106 = scmp.eq.s32.totalorder %s16, 1
    %p107 = por %p105, %p106
    %p109 = scmp.ne.s32.totalorder %s94, %s108
    %p110 = scmp.eq.s32.totalorder %s16, 0
    %p111 = por %p109, %p110
    %p112 = scmp.le.s32.totalorder 1, %s10
    %p113 = scmp.lt.s32.totalorder %s10, 3
    %p114 = pnand %p112, %p113
    %p115 = pneg %p114
    // Predicated region
    $region9: #{conv_block.2} parent=5 // pred_check
      _
    $region10: #{conv_block.2} parent=5 // pred_check_branch
      %117 = sbr.rel (%p114) target = $region12
    $region11: #{conv_block.2} parent=5 // pred_region
      %s118 = ssub.s32 %s10, 1
      // Predicated region
      $region13: #{conv_block.2} parent=11 // pred_check
        %p119 = pneg %p57
      $region14: #{conv_block.2} parent=11 // pred_check_branch
        %121 = sbr.rel (%p119) target = $region16
      $region15: #{conv_block.2} parent=11 // pred_region
        _
      $region16: #{conv_block.2} parent=11 // pred_fallthru
        _
    $region12: #{conv_block.2} parent=5 // pred_fallthru
      _
    %p122 = scmp.lt.s32.totalorder %s10, 2
    // Predicated region
    $region17: #{conv_block.2} parent=5 // pred_check
      %p123 = pneg %p122
    $region18: #{conv_block.2} parent=5 // pred_check_branch
      %125 = sbr.rel (%p123) target = $region20
    $region19: #{conv_block.2} parent=5 // pred_region
      // Predicated region
      $region21: #{conv_block.2} parent=19 // pred_check
        %p126 = pneg %p30
      $region22: #{conv_block.2} parent=19 // pred_check_branch
        %128 = sbr.rel (%p126) target = $region24
      $region23: #{conv_block.2} parent=19 // pred_region
        %s129 = smul.u32 32, %s10
        %p130 = scmp.lt.s32.totalorder %s129, 63
        %s131 = scalar_select %p130, %s129, 63
        %s132 = smul.addr %s131, 8
        %s133 = scalar_lea.vmem %s0, %s132
        %s134 = smul.u32 32, %s10
      $region24: #{conv_block.2} parent=19 // pred_fallthru
        _
    $region20: #{conv_block.2} parent=5 // pred_fallthru
      _
    %p135 = scmp.le.s32.totalorder 1, %s10
    %p136 = scmp.lt.s32.totalorder %s10, 3
    %p137 = pnand %p135, %p136
    %p138 = pneg %p137
    // Predicated region
    $region25: #{conv_block.2} parent=5 // pred_check
      _
    $region26: #{conv_block.2} parent=5 // pred_check_branch
      %140 = sbr.rel (%p137) target = $region28
    $region27: #{conv_block.2} parent=5 // pred_region
      %s141 = ssub.s32 %s10, 1
      %s142 = smul.u32 32, %s15
      %p143 = scmp.lt.s32.totalorder %s142, 63
      %s144 = scalar_select %p143, %s142, 63
      %s145 = smul.addr %s144, 8
      %s146 = scalar_lea.vmem %s0, %s145
      %p147 = pneg %p36
      %p148 = pneg %p33
      %p149 = pneg %p57
      %p150 = pneg %p54
      %p151 = pneg %p83
      %p152 = pneg %p80
      %s153 = smul.u32 32, %s15
      %p154 = scmp.lt.s32.totalorder %s153, 63
      %s155 = scalar_select %p154, %s153, 63
      %s156 = smul.addr %s155, 8
      %s157 = scalar_lea.vmem %s2, %s156
      %p158 = pneg %p104
      %p159 = pneg %p101
      %s160 = smul.u32 32, %s15
      %p161 = scmp.lt.s32.totalorder %s160, 63
      %s162 = scalar_select %p161, %s160, 63
      %s163 = smul.addr %s162, 8
      %s164 = scalar_lea.vmem %s0, %s163
      %s165 = smul.u32 32, %s15
      %s166 = smul.u32 32, %s15
      %p167 = scmp.lt.s32.totalorder %s166, 63
      %s168 = scalar_select %p167, %s166, 63
      %s169 = smul.addr %s168, 8
      %s170 = scalar_lea.vmem %s2, %s169
      %s171 = smul.u32 32, %s15
      %v172 = vld [vmem:[%s164] sm:$0xff]
      %v173 = vld [vmem:[%s164 + $0x8] sm:$0xff]
      %v174 = vld [vmem:[%s164 + $0x10] sm:$0xff]
      %v175 = vld [vmem:[%s164 + $0x18] sm:$0xff]
      %v176 = vld [vmem:[%s164 + $0x20] sm:$0xff]
      %v177 = vld [vmem:[%s164 + $0x28] sm:$0xff]
      %v178 = vld [vmem:[%s164 + $0x30] sm:$0xff]
      %v179 = vld [vmem:[%s164 + $0x38] sm:$0xff]
      %v180 = vld [vmem:[%s164 + $0x40] sm:$0xff]
      %v181 = vld [vmem:[%s164 + $0x48] sm:$0xff]
      %v182 = vld [vmem:[%s164 + $0x50] sm:$0xff]
      %v183 = vld [vmem:[%s164 + $0x58] sm:$0xff]
      %v184 = vld [vmem:[%s164 + $0x60] sm:$0xff]
      %v185 = vld [vmem:[%s164 + $0x68] sm:$0xff]
      %v186 = vld [vmem:[%s164 + $0x70] sm:$0xff]
      %v187 = vld [vmem:[%s164 + $0x78] sm:$0xff]
      %v188 = vld [vmem:[%s164 + $0x80] sm:$0xff]
      %v189 = vld [vmem:[%s164 + $0x88] sm:$0xff]
      %v190 = vld [vmem:[%s164 + $0x90] sm:$0xff]
      %v191 = vld [vmem:[%s164 + $0x98] sm:$0xff]
      %v192 = vld [vmem:[%s164 + $0xa0] sm:$0xff]
      %v193 = vld [vmem:[%s164 + $0xa8] sm:$0xff]
      %v194 = vld [vmem:[%s164 + $0xb0] sm:$0xff]
      %v195 = vld [vmem:[%s164 + $0xb8] sm:$0xff]
      %v196 = vld [vmem:[%s164 + $0xc0] sm:$0xff]
      %v197 = vld [vmem:[%s164 + $0xc8] sm:$0xff]
      %v198 = vld [vmem:[%s164 + $0xd0] sm:$0xff]
      %v199 = vld [vmem:[%s164 + $0xd8] sm:$0xff]
      %v200 = vld [vmem:[%s164 + $0xe0] sm:$0xff]
      %v201 = vld [vmem:[%s164 + $0xe8] sm:$0xff]
      %v202 = vld [vmem:[%s164 + $0xf0] sm:$0xff]
      %v203 = vld [vmem:[%s164 + $0xf8] sm:$0xff]
      %v204 = vld [vmem:[%s1] sm:$0xff]
      %v205 = vld [vmem:[%s1 + $0x8] sm:$0xff]
      %v206 = vld [vmem:[%s1 + $0x10] sm:$0xff]
      %v207 = vld [vmem:[%s1 + $0x18] sm:$0xff]
      %v208 = vld [vmem:[%s1 + $0x20] sm:$0xff]
      %v209 = vld [vmem:[%s1 + $0x28] sm:$0xff]
      %v210 = vld [vmem:[%s1 + $0x30] sm:$0xff]
      %v211 = vld [vmem:[%s1 + $0x38] sm:$0xff]
      %v212 = vld [vmem:[%s1 + $0x40] sm:$0xff]
      %v213 = vld [vmem:[%s1 + $0x48] sm:$0xff]
      %v214 = vld [vmem:[%s1 + $0x50] sm:$0xff]
      %v215 = vld [vmem:[%s1 + $0x58] sm:$0xff]
      %v216 = vld [vmem:[%s1 + $0x60] sm:$0xff]
      %v217 = vld [vmem:[%s1 + $0x68] sm:$0xff]
      %v218 = vld [vmem:[%s1 + $0x70] sm:$0xff]
      %v219 = vld [vmem:[%s1 + $0x78] sm:$0xff]
      %220 = vmatprep.subr.mxu0 0.0
      %221 = vmatpush1.msra.mxu0 %v219
      %222 = vmatprep.subr.mxu0 0.0
      %223 = vmatpush1.msra.mxu0 %v218
      %224 = vmatprep.subr.mxu0 0.0
      %225 = vmatpush1.msra.mxu0 %v217
      %226 = vmatprep.subr.mxu0 0.0
      %227 = vmatpush1.msra.mxu0 %v216
      %228 = vmatprep.subr.mxu0 0.0
      %229 = vmatpush1.msra.mxu0 %v215
      %230 = vmatprep.subr.mxu0 0.0
      %231 = vmatpush1.msra.mxu0 %v214
      %232 = vmatprep.subr.mxu0 0.0
      %233 = vmatpush1.msra.mxu0 %v213
      %234 = vmatprep.subr.mxu0 0.0
      %235 = vmatpush1.msra.mxu0 %v212
      %236 = vmatprep.subr.mxu0 0.0
      %237 = vmatpush1.msra.mxu0 %v211
      %238 = vmatprep.subr.mxu0 0.0
      %239 = vmatpush1.msra.mxu0 %v210
      %240 = vmatprep.subr.mxu0 0.0
      %241 = vmatpush1.msra.mxu0 %v209
      %242 = vmatprep.subr.mxu0 0.0
      %243 = vmatpush1.msra.mxu0 %v208
      %244 = vmatprep.subr.mxu0 0.0
      %245 = vmatpush1.msra.mxu0 %v207
      %246 = vmatprep.subr.mxu0 0.0
      %247 = vmatpush1.msra.mxu0 %v206
      %248 = vmatprep.subr.mxu0 0.0
      %249 = vmatpush1.msra.mxu0 %v205
      %250 = vmatprep.subr.mxu0 0.0
      %251 = vmatpush1.msra.mxu0 %v204
      %252 = vmatprep.subr.mxu0 0.0
      %253 = vmatpush2.msra.mxu0 0.0
      %254 = vmatprep.subr.mxu0 0.0
      %255 = vmatpush2.msra.mxu0 0.0
      %256 = vmatprep.subr.mxu0 0.0
      %257 = vmatpush2.msra.mxu0 0.0
      %258 = vmatprep.subr.mxu0 0.0
      %259 = vmatpush2.msra.mxu0 0.0
      %260 = vmatprep.subr.mxu0 0.0
      %261 = vmatpush2.msra.mxu0 0.0
      %262 = vmatprep.subr.mxu0 0.0
      %263 = vmatpush2.msra.mxu0 0.0
      %264 = vmatprep.subr.mxu0 0.0
      %265 = vmatpush2.msra.mxu0 0.0
      %266 = vmatprep.subr.mxu0 0.0
      %267 = vmatpush2.msra.mxu0 0.0
      %268 = vmatprep.subr.mxu0 0.0
      %269 = vmatpush2.msra.mxu0 0.0
      %270 = vmatprep.subr.mxu0 0.0
      %271 = vmatpush2.msra.mxu0 0.0
      %272 = vmatprep.subr.mxu0 0.0
      %273 = vmatpush2.msra.mxu0 0.0
      %274 = vmatprep.subr.mxu0 0.0
      %275 = vmatpush2.msra.mxu0 0.0
      %276 = vmatprep.subr.mxu0 0.0
      %277 = vmatpush2.msra.mxu0 0.0
      %278 = vmatprep.subr.mxu0 0.0
      %279 = vmatpush2.msra.mxu0 0.0
      %280 = vmatprep.subr.mxu0 0.0
      %281 = vmatpush2.msra.mxu0 0.0
      %282 = vmatprep.subr.mxu0 0.0
      %283 = vmatpush2.msra.mxu0 0.0
      %284 = vmatprep.mubr.f32.mxu0 0.0
      %285 = vmatmul.mubr.f32.gmra.mxu0 %v172
      %v286 = vpop.f32.mrf.mxu0
      %v287 = vadd.f32 0.0, %v286
      %v288 = vpop.f32.mrf.mxu0
      %289 = vmatprep.mubr.f32.mxu0 0.0
      %290 = vmatmul.mubr.f32.gmra.mxu0 %v173
      %v291 = vpop.f32.mrf.mxu0
      %v292 = vadd.f32 0.0, %v291
      %v293 = vpop.f32.mrf.mxu0
      %294 = vmatprep.mubr.f32.mxu0 0.0
      %295 = vmatmul.mubr.f32.gmra.mxu0 %v174
      %v296 = vpop.f32.mrf.mxu0
      %v297 = vadd.f32 0.0, %v296
      %v298 = vpop.f32.mrf.mxu0
      %299 = vmatprep.mubr.f32.mxu0 0.0
      %300 = vmatmul.mubr.f32.gmra.mxu0 %v175
      %v301 = vpop.f32.mrf.mxu0
      %v302 = vadd.f32 0.0, %v301
      %v303 = vpop.f32.mrf.mxu0
      %304 = vmatprep.mubr.f32.mxu0 0.0
      %305 = vmatmul.mubr.f32.gmra.mxu0 %v176
      %v306 = vpop.f32.mrf.mxu0
      %v307 = vadd.f32 0.0, %v306
      %v308 = vpop.f32.mrf.mxu0
      %309 = vmatprep.mubr.f32.mxu0 0.0
      %310 = vmatmul.mubr.f32.gmra.mxu0 %v177
      %v311 = vpop.f32.mrf.mxu0
      %v312 = vadd.f32 0.0, %v311
      %v313 = vpop.f32.mrf.mxu0
      %314 = vmatprep.mubr.f32.mxu0 0.0
      %315 = vmatmul.mubr.f32.gmra.mxu0 %v178
      %v316 = vpop.f32.mrf.mxu0
      %v317 = vadd.f32 0.0, %v316
      %v318 = vpop.f32.mrf.mxu0
      %319 = vmatprep.mubr.f32.mxu0 0.0
      %320 = vmatmul.mubr.f32.gmra.mxu0 %v179
      %v321 = vpop.f32.mrf.mxu0
      %v322 = vadd.f32 0.0, %v321
      %v323 = vpop.f32.mrf.mxu0
      %324 = vmatprep.mubr.f32.mxu0 0.0
      %325 = vmatmul.mubr.f32.gmra.mxu0 %v180
      %v326 = vpop.f32.mrf.mxu0
      %v327 = vadd.f32 0.0, %v326
      %v328 = vpop.f32.mrf.mxu0
      %329 = vmatprep.mubr.f32.mxu0 0.0
      %330 = vmatmul.mubr.f32.gmra.mxu0 %v181
      %v331 = vpop.f32.mrf.mxu0
      %v332 = vadd.f32 0.0, %v331
      %v333 = vpop.f32.mrf.mxu0
      %334 = vmatprep.mubr.f32.mxu0 0.0
      %335 = vmatmul.mubr.f32.gmra.mxu0 %v182
      %v336 = vpop.f32.mrf.mxu0
      %v337 = vadd.f32 0.0, %v336
      %v338 = vpop.f32.mrf.mxu0
      %339 = vmatprep.mubr.f32.mxu0 0.0
      %340 = vmatmul.mubr.f32.gmra.mxu0 %v183
      %v341 = vpop.f32.mrf.mxu0
      %v342 = vadd.f32 0.0, %v341
      %v343 = vpop.f32.mrf.mxu0
      %344 = vmatprep.mubr.f32.mxu0 0.0
      %345 = vmatmul.mubr.f32.gmra.mxu0 %v184
      %v346 = vpop.f32.mrf.mxu0
      %v347 = vadd.f32 0.0, %v346
      %v348 = vpop.f32.mrf.mxu0
      %349 = vmatprep.mubr.f32.mxu0 0.0
      %350 = vmatmul.mubr.f32.gmra.mxu0 %v185
      %v351 = vpop.f32.mrf.mxu0
      %v352 = vadd.f32 0.0, %v351
      %v353 = vpop.f32.mrf.mxu0
      %354 = vmatprep.mubr.f32.mxu0 0.0
      %355 = vmatmul.mubr.f32.gmra.mxu0 %v186
      %v356 = vpop.f32.mrf.mxu0
      %v357 = vadd.f32 0.0, %v356
      %v358 = vpop.f32.mrf.mxu0
      %359 = vmatprep.mubr.f32.mxu0 0.0
      %360 = vmatmul.mubr.f32.gmra.mxu0 %v187
      %v361 = vpop.f32.mrf.mxu0
      %v362 = vadd.f32 0.0, %v361
      %v363 = vpop.f32.mrf.mxu0
      %364 = vmatprep.mubr.f32.mxu0 0.0
      %365 = vmatmul.mubr.f32.gmra.mxu0 %v188
      %v366 = vpop.f32.mrf.mxu0
      %v367 = vadd.f32 0.0, %v366
      %v368 = vpop.f32.mrf.mxu0
      %369 = vmatprep.mubr.f32.mxu0 0.0
      %370 = vmatmul.mubr.f32.gmra.mxu0 %v189
      %v371 = vpop.f32.mrf.mxu0
      %v372 = vadd.f32 0.0, %v371
      %v373 = vpop.f32.mrf.mxu0
      %374 = vmatprep.mubr.f32.mxu0 0.0
      %375 = vmatmul.mubr.f32.gmra.mxu0 %v190
      %v376 = vpop.f32.mrf.mxu0
      %v377 = vadd.f32 0.0, %v376
      %v378 = vpop.f32.mrf.mxu0
      %379 = vmatprep.mubr.f32.mxu0 0.0
      %380 = vmatmul.mubr.f32.gmra.mxu0 %v191
      %v381 = vpop.f32.mrf.mxu0
      %v382 = vadd.f32 0.0, %v381
      %v383 = vpop.f32.mrf.mxu0
      %384 = vmatprep.mubr.f32.mxu0 0.0
      %385 = vmatmul.mubr.f32.gmra.mxu0 %v192
      %v386 = vpop.f32.mrf.mxu0
      %v387 = vadd.f32 0.0, %v386
      %v388 = vpop.f32.mrf.mxu0
      %389 = vmatprep.mubr.f32.mxu0 0.0
      %390 = vmatmul.mubr.f32.gmra.mxu0 %v193
      %v391 = vpop.f32.mrf.mxu0
      %v392 = vadd.f32 0.0, %v391
      %v393 = vpop.f32.mrf.mxu0
      %394 = vmatprep.mubr.f32.mxu0 0.0
      %395 = vmatmul.mubr.f32.gmra.mxu0 %v194
      %v396 = vpop.f32.mrf.mxu0
      %v397 = vadd.f32 0.0, %v396
      %v398 = vpop.f32.mrf.mxu0
      %399 = vmatprep.mubr.f32.mxu0 0.0
      %400 = vmatmul.mubr.f32.gmra.mxu0 %v195
      %v401 = vpop.f32.mrf.mxu0
      %v402 = vadd.f32 0.0, %v401
      %v403 = vpop.f32.mrf.mxu0
      %404 = vmatprep.mubr.f32.mxu0 0.0
      %405 = vmatmul.mubr.f32.gmra.mxu0 %v196
      %v406 = vpop.f32.mrf.mxu0
      %v407 = vadd.f32 0.0, %v406
      %v408 = vpop.f32.mrf.mxu0
      %409 = vmatprep.mubr.f32.mxu0 0.0
      %410 = vmatmul.mubr.f32.gmra.mxu0 %v197
      %v411 = vpop.f32.mrf.mxu0
      %v412 = vadd.f32 0.0, %v411
      %v413 = vpop.f32.mrf.mxu0
      %414 = vmatprep.mubr.f32.mxu0 0.0
      %415 = vmatmul.mubr.f32.gmra.mxu0 %v198
      %v416 = vpop.f32.mrf.mxu0
      %v417 = vadd.f32 0.0, %v416
      %v418 = vpop.f32.mrf.mxu0
      %419 = vmatprep.mubr.f32.mxu0 0.0
      %420 = vmatmul.mubr.f32.gmra.mxu0 %v199
      %v421 = vpop.f32.mrf.mxu0
      %v422 = vadd.f32 0.0, %v421
      %v423 = vpop.f32.mrf.mxu0
      %424 = vmatprep.mubr.f32.mxu0 0.0
      %425 = vmatmul.mubr.f32.gmra.mxu0 %v200
      %v426 = vpop.f32.mrf.mxu0
      %v427 = vadd.f32 0.0, %v426
      %v428 = vpop.f32.mrf.mxu0
      %429 = vmatprep.mubr.f32.mxu0 0.0
      %430 = vmatmul.mubr.f32.gmra.mxu0 %v201
      %v431 = vpop.f32.mrf.mxu0
      %v432 = vadd.f32 0.0, %v431
      %v433 = vpop.f32.mrf.mxu0
      %434 = vmatprep.mubr.f32.mxu0 0.0
      %435 = vmatmul.mubr.f32.gmra.mxu0 %v202
      %v436 = vpop.f32.mrf.mxu0
      %v437 = vadd.f32 0.0, %v436
      %v438 = vpop.f32.mrf.mxu0
      %439 = vmatprep.mubr.f32.mxu0 0.0
      %440 = vmatmul.mubr.f32.gmra.mxu0 %v203
      %v441 = vpop.f32.mrf.mxu0
      %v442 = vadd.f32 0.0, %v441
      %v443 = vpop.f32.mrf.mxu0
      %444 = vdwg.mxu0
      %445 = vst [vmem:[%s170] sm:$0xff] %v287
      %446 = vst [vmem:[%s170 + $0x8] sm:$0xff] %v292
      %447 = vst [vmem:[%s170 + $0x10] sm:$0xff] %v297
      %448 = vst [vmem:[%s170 + $0x18] sm:$0xff] %v302
      %449 = vst [vmem:[%s170 + $0x20] sm:$0xff] %v307
      %450 = vst [vmem:[%s170 + $0x28] sm:$0xff] %v312
      %451 = vst [vmem:[%s170 + $0x30] sm:$0xff] %v317
      %452 = vst [vmem:[%s170 + $0x38] sm:$0xff] %v322
      %453 = vst [vmem:[%s170 + $0x40] sm:$0xff] %v327
      %454 = vst [vmem:[%s170 + $0x48] sm:$0xff] %v332
      %455 = vst [vmem:[%s170 + $0x50] sm:$0xff] %v337
      %456 = vst [vmem:[%s170 + $0x58] sm:$0xff] %v342
      %457 = vst [vmem:[%s170 + $0x60] sm:$0xff] %v347
      %458 = vst [vmem:[%s170 + $0x68] sm:$0xff] %v352
      %459 = vst [vmem:[%s170 + $0x70] sm:$0xff] %v357
      %460 = vst [vmem:[%s170 + $0x78] sm:$0xff] %v362
      %461 = vst [vmem:[%s170 + $0x80] sm:$0xff] %v367
      %462 = vst [vmem:[%s170 + $0x88] sm:$0xff] %v372
      %463 = vst [vmem:[%s170 + $0x90] sm:$0xff] %v377
      %464 = vst [vmem:[%s170 + $0x98] sm:$0xff] %v382
      %465 = vst [vmem:[%s170 + $0xa0] sm:$0xff] %v387
      %466 = vst [vmem:[%s170 + $0xa8] sm:$0xff] %v392
      %467 = vst [vmem:[%s170 + $0xb0] sm:$0xff] %v397
      %468 = vst [vmem:[%s170 + $0xb8] sm:$0xff] %v402
      %469 = vst [vmem:[%s170 + $0xc0] sm:$0xff] %v407
      %470 = vst [vmem:[%s170 + $0xc8] sm:$0xff] %v412
      %471 = vst [vmem:[%s170 + $0xd0] sm:$0xff] %v417
      %472 = vst [vmem:[%s170 + $0xd8] sm:$0xff] %v422
      %473 = vst [vmem:[%s170 + $0xe0] sm:$0xff] %v427
      %474 = vst [vmem:[%s170 + $0xe8] sm:$0xff] %v432
      %475 = vst [vmem:[%s170 + $0xf0] sm:$0xff] %v437
      %476 = vst [vmem:[%s170 + $0xf8] sm:$0xff] %v442
      %p477 = scmp.eq.s32.totalorder %s15, 0
      // Predicated region
      $region29: #{conv_block.2} parent=27 // pred_check
        %p478 = pneg %p477
      $region30: #{conv_block.2} parent=27 // pred_check_branch
        %480 = sbr.rel (%p478) target = $region32
      $region31: #{conv_block.2} parent=27 // pred_region
        %481 = vst [vmem:[%s3] sm:$0x1] 0.0
      $region32: #{conv_block.2} parent=27 // pred_fallthru
        _
      %v482 = vld [vmem:[%s3] sm:$0x1]
      %v483 = vadd.f32 %v287, %v292
      %v484 = vadd.f32 %v483, %v297
      %v485 = vadd.f32 %v484, %v302
      %v486 = vadd.f32 %v485, %v307
      %v487 = vadd.f32 %v486, %v312
      %v488 = vadd.f32 %v487, %v317
      %v489 = vadd.f32 %v488, %v322
      %v490 = vadd.f32 %v489, %v327
      %v491 = vadd.f32 %v490, %v332
      %v492 = vadd.f32 %v491, %v337
      %v493 = vadd.f32 %v492, %v342
      %v494 = vadd.f32 %v493, %v347
      %v495 = vadd.f32 %v494, %v352
      %v496 = vadd.f32 %v495, %v357
      %v497 = vadd.f32 %v496, %v362
      %v498 = vadd.f32 %v497, %v367
      %v499 = vadd.f32 %v498, %v372
      %v500 = vadd.f32 %v499, %v377
      %v501 = vadd.f32 %v500, %v382
      %v502 = vadd.f32 %v501, %v387
      %v503 = vadd.f32 %v502, %v392
      %v504 = vadd.f32 %v503, %v397
      %v505 = vadd.f32 %v504, %v402
      %v506 = vadd.f32 %v505, %v407
      %v507 = vadd.f32 %v506, %v412
      %v508 = vadd.f32 %v507, %v417
      %v509 = vadd.f32 %v508, %v422
      %v510 = vadd.f32 %v509, %v427
      %v511 = vadd.f32 %v510, %v432
      %v512 = vadd.f32 %v511, %v437
      %v513 = vadd.f32 %v512, %v442
      %v514 = vrot.slane %v513, 4
      %v515 = vadd.f32 %v513, %v514
      %v516 = vrot.slane %v515, 2
      %v517 = vadd.f32 %v515, %v516
      %v518 = vrot.slane %v517, 1
      %v519 = vadd.f32 %v517, %v518
      %v520 = vadd.f32 %v482, %v519
      %521 = vst [vmem:[%s3] sm:$0x1] %v520
      %s522 = smul.u32 32, %s15
      %p523 = scmp.lt.s32.totalorder %s522, 63
      %s524 = scalar_select %p523, %s522, 63
      %s525 = smul.addr %s524, 8
      %s526 = scalar_lea.vmem %s2, %s525
      // Predicated region
      $region33: #{conv_block.2} parent=27 // pred_check
        %p527 = pneg %p80
      $region34: #{conv_block.2} parent=27 // pred_check_branch
        %529 = sbr.rel (%p527) target = $region36
      $region35: #{conv_block.2} parent=27 // pred_region
        %s530 = smul.u32 32, %s15
      $region36: #{conv_block.2} parent=27 // pred_fallthru
        _
      // Predicated region
      $region37: #{conv_block.2} parent=27 // pred_check
        %p531 = pneg %p101
      $region38: #{conv_block.2} parent=27 // pred_check_branch
        %533 = sbr.rel (%p531) target = $region40
      $region39: #{conv_block.2} parent=27 // pred_region
        _
      $region40: #{conv_block.2} parent=27 // pred_fallthru
        _
      // Predicated region
      $region41: #{conv_block.2} parent=27 // pred_check
        %p534 = pneg %p101
      $region42: #{conv_block.2} parent=27 // pred_check_branch
        %536 = sbr.rel (%p534) target = $region44
      $region43: #{conv_block.2} parent=27 // pred_region
        _
      $region44: #{conv_block.2} parent=27 // pred_fallthru
        _
    $region28: #{conv_block.2} parent=5 // pred_fallthru
      _
    %p537 = scmp.le.s32.totalorder 2, %s10
    // Predicated region
    $region45: #{conv_block.2} parent=5 // pred_check
      %p538 = pneg %p537
    $region46: #{conv_block.2} parent=5 // pred_check_branch
      %540 = sbr.rel (%p538) target = $region48
    $region47: #{conv_block.2} parent=5 // pred_region
      %s541 = ssub.s32 %s10, 2
      // Predicated region
      $region49: #{conv_block.2} parent=47 // pred_check
        %p542 = pneg %p86
      $region50: #{conv_block.2} parent=47 // pred_check_branch
        %544 = sbr.rel (%p542) target = $region52
      $region51: #{conv_block.2} parent=47 // pred_region
        %s545 = smul.u32 32, %s16
        %p546 = scmp.lt.s32.totalorder %s545, 63
        %s547 = scalar_select %p546, %s545, 63
        %s548 = smul.addr %s547, 8
        %s549 = scalar_lea.vmem %s2, %s548
      $region52: #{conv_block.2} parent=47 // pred_fallthru
        _
    $region48: #{conv_block.2} parent=5 // pred_fallthru
      _
  $region6: #{conv_block.2} parent=0 // loop_footer
    %s14 = sadd.s32 1, %s10
  $region7: #{conv_block.2} parent=0 // loop_footer_branch
    %9 = sbr.rel target = $region3
  $region8: #{conv_block.2} parent=0 // loop_exit
    _

// kernel: conv_block.3
$region0: #{conv_block.3}
  #allocation0 [shape = 'u32[]', space=smem, size = 0x4, offset = 0x4, fixed_abs, tag = 'smem constant byte address 0x4 - core index']
  #allocation1 [shape = 'u32[144,128]{1,0:T(1,128)}', space=vmem, size = 0x12000, scoped, tag = 'internal scratch']
  #allocation2 [shape = 'f32[1,128]{1,0:T(1,128)}', space=vmem, size = 0x200, scoped, tag = 'scratch operand']
  %s0 = inlined_call_operand.vmem [shape: f32[512,128], index: 0, kind: input, shape index: {}]
  %s1 = inlined_call_operand.vmem [shape: f32[1,128], index: 1, kind: input, shape index: {}]
  %s2 = inlined_call_operand.vmem [shape: f32[1,128], index: 2, kind: input, shape index: {}]
  %s3 = inlined_call_operand.vmem [shape: f32[1,128], index: 3, kind: input, shape index: {}]
  %s4 = inlined_call_operand.vmem [shape: f32[512,128], index: 4, kind: output, shape index: {}]
  %s5 = sld [smem:[#allocation0]]
  $region61: #{conv_block.3} parent=0
    _
  %s7 = ssub.s32 1, %s5
  %s8 = scalar_select 0, %s7, %s5
  loop: start=0, step=1, limit=6
  $region2: #{conv_block.3} parent=0 // loop_pre_header
    _
  $region3: #{conv_block.3} parent=0 // loop_header
    %s10 = sphi 0, %s14
    %p11 = scmp.ge.s32.totalorder %s10, 6
    %s17 = sphi 0, %s29
    %s18 = sphi 0, %s25
    %s19 = sphi 0, %s17
    %s20 = sphi 0, %s18
    %s21 = sphi 0, %s19
    %s22 = sphi 0, %s20
    %s32 = sphi 0, %s34
    %s35 = sphi 0, %s32
    %s36 = sphi 0, %s35
    %s52 = sphi 0, %s36
    %s56 = sphi 0, %s56
    %s58 = sphi 0, %s56
    %s59 = sphi 0, %s58
    %s73 = sphi 0, %s59
    %s77 = sphi 0, %s77
    %s79 = sphi 0, %s77
    %s80 = sphi 0, %s79
    %s94 = sphi 0, %s80
    %s98 = sphi 0, %s98
    %s100 = sphi 0, %s98
    %s101 = sphi 0, %s100
    %s115 = sphi 0, %s101
    %s123 = sphi 0, %s125
    %s126 = sphi 0, %s123
    %s127 = sphi 0, %s126
    %s143 = sphi 0, %s127
  $region4: #{conv_block.3} parent=0 // loop_header_branch
    %13 = sbr.rel (%p11) target = $region8
  $region5: #{conv_block.3} parent=0 // loop_body
    %s15 = ssub.s32 %s10, 1
    %s16 = ssub.s32 %s10, 2
    %s23 = sadd.s32 1, %s18
    %p24 = scmp.ge.s32.totalorder %s23, 2
    %s25 = scalar_select %p24, 0, %s23
    %s26 = sadd.s32 1, %s17
    %s27 = scalar_select %p24, %s26, %s17
    %p28 = scmp.ge.s32.totalorder %s27, 2
    %s29 = scalar_select %p28, 0, %s27
    %s30 = ssub.s32 %s18, %s25
    %p31 = scmp.eq.s32.totalorder %s30, 0
    %s33 = sadd.s32 %s32, 1
    %s34 = scalar_select %p31, %s32, %s33
    %p37 = pneg %p31
    %p38 = scmp.eq.s32.totalorder %s10, 3
    %p39 = por %p37, %p38
    %p40 = scmp.ne.s32.totalorder %s32, %s35
    %p41 = scmp.eq.s32.totalorder %s10, 0
    %p42 = por %p40, %p41
    %p43 = scmp.ne.s32.totalorder %s32, %s35
    %p44 = scmp.eq.s32.totalorder %s15, 3
    %p45 = por %p43, %p44
    %p46 = scmp.ne.s32.totalorder %s35, %s36
    %p47 = scmp.eq.s32.totalorder %s15, 0
    %p48 = por %p46, %p47
    %p49 = scmp.ne.s32.totalorder %s35, %s36
    %p50 = scmp.eq.s32.totalorder %s16, 3
    %p51 = por %p49, %p50
    %p53 = scmp.ne.s32.totalorder %s36, %s52
    %p54 = scmp.eq.s32.totalorder %s16, 0
    %p55 = por %p53, %p54
    %s57 = sadd.s32 %s56, 1
    %p60 = scmp.eq.s32.totalorder %s10, 3
    %p61 = scmp.ne.s32.totalorder %s56, %s58
    %p62 = scmp.eq.s32.totalorder %s10, 0
    %p63 = por %p61, %p62
    %p64 = scmp.ne.s32.totalorder %s56, %s58
    %p65 = scmp.eq.s32.totalorder %s15, 3
    %p66 = por %p64, %p65
    %p67 = scmp.ne.s32.totalorder %s58, %s59
    %p68 = scmp.eq.s32.totalorder %s15, 0
    %p69 = por %p67, %p68
    %p70 = scmp.ne.s32.totalorder %s58, %s59
    %p71 = scmp.eq.s32.totalorder %s16, 3
    %p72 = por %p70, %p71
    %p74 = scmp.ne.s32.totalorder %s59, %s73
    %p75 = scmp.eq.s32.totalorder %s16, 0
    %p76 = por %p74, %p75
    %s78 = sadd.s32 %s77, 1
    %p81 = scmp.eq.s32.totalorder %s10, 3
    %p82 = scmp.ne.s32.totalorder %s77, %s79
    %p83 = scmp.eq.s32.totalorder %s10, 0
    %p84 = por %p82, %p83
    %p85 = scmp.ne.s32.totalorder %s77, %s79
    %p86 = scmp.eq.s32.totalorder %s15, 3
    %p87 = por %p85, %p86
    %p88 = scmp.ne.s32.totalorder %s79, %s80
    %p89 = scmp.eq.s32.totalorder %s15, 0
    %p90 = por %p88, %p89
    %p91 = scmp.ne.s32.totalorder %s79, %s80
    %p92 = scmp.eq.s32.totalorder %s16, 3
    %p93 = por %p91, %p92
    %p95 = scmp.ne.s32.totalorder %s80, %s94
    %p96 = scmp.eq.s32.totalorder %s16, 0
    %p97 = por %p95, %p96
    %s99 = sadd.s32 %s98, 1
    %p102 = scmp.eq.s32.totalorder %s10, 3
    %p103 = scmp.ne.s32.totalorder %s98, %s100
    %p104 = scmp.eq.s32.totalorder %s10, 0
    %p105 = por %p103, %p104
    %p106 = scmp.ne.s32.totalorder %s98, %s100
    %p107 = scmp.eq.s32.totalorder %s15, 3
    %p108 = por %p106, %p107
    %p109 = scmp.ne.s32.totalorder %s100, %s101
    %p110 = scmp.eq.s32.totalorder %s15, 0
    %p111 = por %p109, %p110
    %p112 = scmp.ne.s32.totalorder %s100, %s101
    %p113 = scmp.eq.s32.totalorder %s16, 3
    %p114 = por %p112, %p113
    %p116 = scmp.ne.s32.totalorder %s101, %s115
    %p117 = scmp.eq.s32.totalorder %s16, 0
    %p118 = por %p116, %p117
    %s119 = smul.u32 %s18, %s17
    %s120 = smul.u32 %s25, %s29
    %s121 = ssub.s32 %s119, %s120
    %p122 = scmp.eq.s32.totalorder %s121, 0
    %s124 = sadd.s32 %s123, 1
    %s125 = scalar_select %p122, %s123, %s124
    %p128 = pneg %p122
    %p129 = scmp.eq.s32.totalorder %s10, 3
    %p130 = por %p128, %p129
    %p131 = scmp.ne.s32.totalorder %s123, %s126
    %p132 = scmp.eq.s32.totalorder %s10, 0
    %p133 = por %p131, %p132
    %p134 = scmp.ne.s32.totalorder %s123, %s126
    %p135 = scmp.eq.s32.totalorder %s15, 3
    %p136 = por %p134, %p135
    %p137 = scmp.ne.s32.totalorder %s126, %s127
    %p138 = scmp.eq.s32.totalorder %s15, 0
    %p139 = por %p137, %p138
    %p140 = scmp.ne.s32.totalorder %s126, %s127
    %p141 = scmp.eq.s32.totalorder %s16, 3
    %p142 = por %p140, %p141
    %p144 = scmp.ne.s32.totalorder %s127, %s143
    %p145 = scmp.eq.s32.totalorder %s16, 0
    %p146 = por %p144, %p145
    %p147 = scmp.le.s32.totalorder 1, %s10
    %p148 = scmp.lt.s32.totalorder %s10, 5
    %p149 = pnand %p147, %p148
    %p150 = pneg %p149
    // Predicated region
    $region9: #{conv_block.3} parent=5 // pred_check
      _
    $region10: #{conv_block.3} parent=5 // pred_check_branch
      %152 = sbr.rel (%p149) target = $region12
    $region11: #{conv_block.3} parent=5 // pred_region
      %s153 = ssub.s32 %s10, 1
      // Predicated region
      $region13: #{conv_block.3} parent=11 // pred_check
        %p154 = pneg %p69
      $region14: #{conv_block.3} parent=11 // pred_check_branch
        %156 = sbr.rel (%p154) target = $region16
      $region15: #{conv_block.3} parent=11 // pred_region
        _
      $region16: #{conv_block.3} parent=11 // pred_fallthru
        _
      // Predicated region
      $region17: #{conv_block.3} parent=11 // pred_check
        %p157 = pneg %p90
      $region18: #{conv_block.3} parent=11 // pred_check_branch
        %159 = sbr.rel (%p157) target = $region20
      $region19: #{conv_block.3} parent=11 // pred_region
        _
      $region20: #{conv_block.3} parent=11 // pred_fallthru
        _
      // Predicated region
      $region21: #{conv_block.3} parent=11 // pred_check
        %p160 = pneg %p111
      $region22: #{conv_block.3} parent=11 // pred_check_branch
        %162 = sbr.rel (%p160) target = $region24
      $region23: #{conv_block.3} parent=11 // pred_region
        _
      $region24: #{conv_block.3} parent=11 // pred_fallthru
        _
    $region12: #{conv_block.3} parent=5 // pred_fallthru
      _
    %p163 = scmp.lt.s32.totalorder %s10, 4
    // Predicated region
    $region25: #{conv_block.3} parent=5 // pred_check
      %p164 = pneg %p163
    $region26: #{conv_block.3} parent=5 // pred_check_branch
      %166 = sbr.rel (%p164) target = $region28
    $region27: #{conv_block.3} parent=5 // pred_region
      // Predicated region
      $region29: #{conv_block.3} parent=27 // pred_check
        %p167 = pneg %p42
      $region30: #{conv_block.3} parent=27 // pred_check_branch
        %169 = sbr.rel (%p167) target = $region32
      $region31: #{conv_block.3} parent=27 // pred_region
        %s170 = smul.u32 32, %s18
        %p171 = scmp.lt.s32.totalorder %s170, 63
        %s172 = scalar_select %p171, %s170, 63
        %s173 = smul.addr %s172, 8
        %s174 = scalar_lea.vmem %s0, %s173
        %s175 = smul.u32 32, %s18
      $region32: #{conv_block.3} parent=27 // pred_fallthru
        _
    $region28: #{conv_block.3} parent=5 // pred_fallthru
      _
    %p176 = scmp.le.s32.totalorder 1, %s10
    %p177 = scmp.lt.s32.totalorder %s10, 5
    %p178 = pnand %p176, %p177
    %p179 = pneg %p178
    // Predicated region
    $region33: #{conv_block.3} parent=5 // pred_check
      _
    $region34: #{conv_block.3} parent=5 // pred_check_branch
      %181 = sbr.rel (%p178) target = $region36
    $region35: #{conv_block.3} parent=5 // pred_region
      %s182 = ssub.s32 %s10, 1
      %s183 = smul.u32 32, %s20
      %p184 = scmp.lt.s32.totalorder %s183, 63
      %s185 = scalar_select %p184, %s183, 63
      %s186 = smul.addr %s185, 8
      %s187 = scalar_lea.vmem %s0, %s186
      %p188 = pneg %p48
      %p189 = pneg %p45
      %p190 = pneg %p69
      %p191 = pneg %p66
      %p192 = pneg %p90
      %p193 = pneg %p87
      %p194 = pneg %p111
      %p195 = pneg %p108
      %p196 = pneg %p139
      %p197 = pneg %p136
      %s198 = smul.u32 %s20, %s19
      %s199 = smul.u32 32, %s198
      %p200 = scmp.lt.s32.totalorder %s199, 63
      %s201 = scalar_select %p200, %s199, 63
      %s202 = smul.addr %s201, 8
      %s203 = scalar_lea.vmem %s4, %s202
      %s204 = smul.u32 32, %s20
      %p205 = scmp.lt.s32.totalorder %s204, 63
      %s206 = scalar_select %p205, %s204, 63
      %s207 = smul.addr %s206, 8
      %s208 = scalar_lea.vmem %s0, %s207
      %s209 = smul.u32 32, %s20
      %s210 = smul.u32 %s20, %s19
      %s211 = smul.u32 32, %s210
      %p212 = scmp.lt.s32.totalorder %s211, 63
      %s213 = scalar_select %p212, %s211, 63
      %s214 = smul.addr %s213, 8
      %s215 = scalar_lea.vmem %s4, %s214
      %s216 = smul.u32 %s20, %s19
      %s217 = smul.u32 32, %s216
      %p218 = scmp.eq.s32.totalorder %s19, 0
      %p219 = scmp.eq.s32.totalorder %s20, 0
      %p220 = pnand %p218, %p219
      %p221 = pneg %p220
      // Predicated region
      $region37: #{conv_block.3} parent=35 // pred_check
        _
      $region38: #{conv_block.3} parent=35 // pred_check_branch
        %223 = sbr.rel (%p220) target = $region40
      $region39: #{conv_block.3} parent=35 // pred_region
        %224 = vst [vmem:[#allocation2] sm:$0x1] 0.0
      $region40: #{conv_block.3} parent=35 // pred_fallthru
        _
      %v225 = vld [vmem:[%s208] sm:$0xff]
      %v226 = vld [vmem:[%s208 + $0x8] sm:$0xff]
      %v227 = vld [vmem:[%s208 + $0x10] sm:$0xff]
      %v228 = vld [vmem:[%s208 + $0x18] sm:$0xff]
      %v229 = vld [vmem:[%s208 + $0x20] sm:$0xff]
      %v230 = vld [vmem:[%s208 + $0x28] sm:$0xff]
      %v231 = vld [vmem:[%s208 + $0x30] sm:$0xff]
      %v232 = vld [vmem:[%s208 + $0x38] sm:$0xff]
      %v233 = vld [vmem:[%s208 + $0x40] sm:$0xff]
      %v234 = vld [vmem:[%s208 + $0x48] sm:$0xff]
      %v235 = vld [vmem:[%s208 + $0x50] sm:$0xff]
      %v236 = vld [vmem:[%s208 + $0x58] sm:$0xff]
      %v237 = vld [vmem:[%s208 + $0x60] sm:$0xff]
      %v238 = vld [vmem:[%s208 + $0x68] sm:$0xff]
      %v239 = vld [vmem:[%s208 + $0x70] sm:$0xff]
      %v240 = vld [vmem:[%s208 + $0x78] sm:$0xff]
      %v241 = vld [vmem:[%s208 + $0x80] sm:$0xff]
      %v242 = vld [vmem:[%s208 + $0x88] sm:$0xff]
      %v243 = vld [vmem:[%s208 + $0x90] sm:$0xff]
      %v244 = vld [vmem:[%s208 + $0x98] sm:$0xff]
      %v245 = vld [vmem:[%s208 + $0xa0] sm:$0xff]
      %v246 = vld [vmem:[%s208 + $0xa8] sm:$0xff]
      %v247 = vld [vmem:[%s208 + $0xb0] sm:$0xff]
      %v248 = vld [vmem:[%s208 + $0xb8] sm:$0xff]
      %v249 = vld [vmem:[%s208 + $0xc0] sm:$0xff]
      %v250 = vld [vmem:[%s208 + $0xc8] sm:$0xff]
      %v251 = vld [vmem:[%s208 + $0xd0] sm:$0xff]
      %v252 = vld [vmem:[%s208 + $0xd8] sm:$0xff]
      %v253 = vld [vmem:[%s208 + $0xe0] sm:$0xff]
      %v254 = vld [vmem:[%s208 + $0xe8] sm:$0xff]
      %v255 = vld [vmem:[%s208 + $0xf0] sm:$0xff]
      %v256 = vld [vmem:[%s208 + $0xf8] sm:$0xff]
      %v257 = vld [vmem:[%s1] sm:$0x1]
      // Predicated region
      $region41: #{conv_block.3} parent=35 // pred_check
        %p258 = pneg %p218
      $region42: #{conv_block.3} parent=35 // pred_check_branch
        %260 = sbr.rel (%p258) target = $region44
      $region43: #{conv_block.3} parent=35 // pred_region
        %v262 = vlaneseq
        %v263 = vshrl.u32 %v262, 7
        %v264 = vsub.s32 0, %v263
        %v265 = vrot.slane %v257, %v264
        %v267 = vsub.f32 %v225, %v265
        %v268 = vsub.f32 %v226, %v265
        %v269 = vsub.f32 %v227, %v265
        %v270 = vsub.f32 %v228, %v265
        %v271 = vsub.f32 %v229, %v265
        %v272 = vsub.f32 %v230, %v265
        %v273 = vsub.f32 %v231, %v265
        %v274 = vsub.f32 %v232, %v265
        %v275 = vsub.f32 %v233, %v265
        %v276 = vsub.f32 %v234, %v265
        %v277 = vsub.f32 %v235, %v265
        %v278 = vsub.f32 %v236, %v265
        %v279 = vsub.f32 %v237, %v265
        %v280 = vsub.f32 %v238, %v265
        %v281 = vsub.f32 %v239, %v265
        %v282 = vsub.f32 %v240, %v265
        %v283 = vsub.f32 %v241, %v265
        %v284 = vsub.f32 %v242, %v265
        %v285 = vsub.f32 %v243, %v265
        %v286 = vsub.f32 %v244, %v265
        %v287 = vsub.f32 %v245, %v265
        %v288 = vsub.f32 %v246, %v265
        %v289 = vsub.f32 %v247, %v265
        %v290 = vsub.f32 %v248, %v265
        %v291 = vsub.f32 %v249, %v265
        %v292 = vsub.f32 %v250, %v265
        %v293 = vsub.f32 %v251, %v265
        %v294 = vsub.f32 %v252, %v265
        %v295 = vsub.f32 %v253, %v265
        %v296 = vsub.f32 %v254, %v265
        %v297 = vsub.f32 %v255, %v265
        %v298 = vsub.f32 %v256, %v265
        %v299 = vlaneseq
        %v300 = vshrl.u32 %v299, 7
        %v301 = vadd.s32 %v300, 8
        %v302 = vadd.s32 %v300, 16
        %v303 = vadd.s32 %v300, 24
        %v304 = vadd.s32 %v300, 32
        %v305 = vadd.s32 %v300, 40
        %v306 = vadd.s32 %v300, 48
        %v307 = vadd.s32 %v300, 56
        %v308 = vadd.s32 %v300, 64
        %v309 = vadd.s32 %v300, 72
        %v310 = vadd.s32 %v300, 80
        %v311 = vadd.s32 %v300, 88
        %v312 = vadd.s32 %v300, 96
        %v313 = vadd.s32 %v300, 104
        %v314 = vadd.s32 %v300, 112
        %v315 = vadd.s32 %v300, 120
        %v316 = vadd.s32 %v300, 128
        %v317 = vadd.s32 %v300, 136
        %v318 = vadd.s32 %v300, 144
        %v319 = vadd.s32 %v300, 152
        %v320 = vadd.s32 %v300, 160
        %v321 = vadd.s32 %v300, 168
        %v322 = vadd.s32 %v300, 176
        %v323 = vadd.s32 %v300, 184
        %v324 = vadd.s32 %v300, 192
        %v325 = vadd.s32 %v300, 200
        %v326 = vadd.s32 %v300, 208
        %v327 = vadd.s32 %v300, 216
        %v328 = vadd.s32 %v300, 224
        %v329 = vadd.s32 %v300, 232
        %v330 = vadd.s32 %v300, 240
        %v331 = vadd.s32 %v300, 248
        %s332 = smul.u32 %s20, 256
        %v333 = vstv %s332
        %v334 = vadd.s32 %v300, %v333
        %v335 = vadd.s32 %v301, %v333
        %v336 = vadd.s32 %v302, %v333
        %v337 = vadd.s32 %v303, %v333
        %v338 = vadd.s32 %v304, %v333
        %v339 = vadd.s32 %v305, %v333
        %v340 = vadd.s32 %v306, %v333
        %v341 = vadd.s32 %v307, %v333
        %v342 = vadd.s32 %v308, %v333
        %v343 = vadd.s32 %v309, %v333
        %v344 = vadd.s32 %v310, %v333
        %v345 = vadd.s32 %v311, %v333
        %v346 = vadd.s32 %v312, %v333
        %v347 = vadd.s32 %v313, %v333
        %v348 = vadd.s32 %v314, %v333
        %v349 = vadd.s32 %v315, %v333
        %v350 = vadd.s32 %v316, %v333
        %v351 = vadd.s32 %v317, %v333
        %v352 = vadd.s32 %v318, %v333
        %v353 = vadd.s32 %v319, %v333
        %v354 = vadd.s32 %v320, %v333
        %v355 = vadd.s32 %v321, %v333
        %v356 = vadd.s32 %v322, %v333
        %v357 = vadd.s32 %v323, %v333
        %v358 = vadd.s32 %v324, %v333
        %v359 = vadd.s32 %v325, %v333
        %v360 = vadd.s32 %v326, %v333
        %v361 = vadd.s32 %v327, %v333
        %v362 = vadd.s32 %v328, %v333
        %v363 = vadd.s32 %v329, %v333
        %v364 = vadd.s32 %v330, %v333
        %v365 = vadd.s32 %v331, %v333
        %vm366 = vcmp.lt.s32.totalorder %v334, 512
        %vm367 = vcmp.lt.s32.totalorder %v335, 512
        %vm368 = vcmp.lt.s32.totalorder %v336, 512
        %vm369 = vcmp.lt.s32.totalorder %v337, 512
        %vm370 = vcmp.lt.s32.totalorder %v338, 512
        %vm371 = vcmp.lt.s32.totalorder %v339, 512
        %vm372 = vcmp.lt.s32.totalorder %v340, 512
        %vm373 = vcmp.lt.s32.totalorder %v341, 512
        %vm374 = vcmp.lt.s32.totalorder %v342, 512
        %vm375 = vcmp.lt.s32.totalorder %v343, 512
        %vm376 = vcmp.lt.s32.totalorder %v344, 512
        %vm377 = vcmp.lt.s32.totalorder %v345, 512
        %vm378 = vcmp.lt.s32.totalorder %v346, 512
        %vm379 = vcmp.lt.s32.totalorder %v347, 512
        %vm380 = vcmp.lt.s32.totalorder %v348, 512
        %vm381 = vcmp.lt.s32.totalorder %v349, 512
        %vm382 = vcmp.lt.s32.totalorder %v350, 512
        %vm383 = vcmp.lt.s32.totalorder %v351, 512
        %vm384 = vcmp.lt.s32.totalorder %v352, 512
        %vm385 = vcmp.lt.s32.totalorder %v353, 512
        %vm386 = vcmp.lt.s32.totalorder %v354, 512
        %vm387 = vcmp.lt.s32.totalorder %v355, 512
        %vm388 = vcmp.lt.s32.totalorder %v356, 512
        %vm389 = vcmp.lt.s32.totalorder %v357, 512
        %vm390 = vcmp.lt.s32.totalorder %v358, 512
        %vm391 = vcmp.lt.s32.totalorder %v359, 512
        %vm392 = vcmp.lt.s32.totalorder %v360, 512
        %vm393 = vcmp.lt.s32.totalorder %v361, 512
        %vm394 = vcmp.lt.s32.totalorder %v362, 512
        %vm395 = vcmp.lt.s32.totalorder %v363, 512
        %vm396 = vcmp.lt.s32.totalorder %v364, 512
        %vm397 = vcmp.lt.s32.totalorder %v365, 512
        %v398 = vmul.f32 %v267, %v267
        %v399 = vmul.f32 %v268, %v268
        %v400 = vmul.f32 %v269, %v269
        %v401 = vmul.f32 %v270, %v270
        %v402 = vmul.f32 %v271, %v271
        %v403 = vmul.f32 %v272, %v272
        %v404 = vmul.f32 %v273, %v273
        %v405 = vmul.f32 %v274, %v274
        %v406 = vmul.f32 %v275, %v275
        %v407 = vmul.f32 %v276, %v276
        %v408 = vmul.f32 %v277, %v277
        %v409 = vmul.f32 %v278, %v278
        %v410 = vmul.f32 %v279, %v279
        %v411 = vmul.f32 %v280, %v280
        %v412 = vmul.f32 %v281, %v281
        %v413 = vmul.f32 %v282, %v282
        %v414 = vmul.f32 %v283, %v283
        %v415 = vmul.f32 %v284, %v284
        %v416 = vmul.f32 %v285, %v285
        %v417 = vmul.f32 %v286, %v286
        %v418 = vmul.f32 %v287, %v287
        %v419 = vmul.f32 %v288, %v288
        %v420 = vmul.f32 %v289, %v289
        %v421 = vmul.f32 %v290, %v290
        %v422 = vmul.f32 %v291, %v291
        %v423 = vmul.f32 %v292, %v292
        %v424 = vmul.f32 %v293, %v293
        %v425 = vmul.f32 %v294, %v294
        %v426 = vmul.f32 %v295, %v295
        %v427 = vmul.f32 %v296, %v296
        %v428 = vmul.f32 %v297, %v297
        %v429 = vmul.f32 %v298, %v298
        %v430 = vsel %vm366, %v398, 0.0
        %v431 = vsel %vm367, %v399, 0.0
        %v432 = vsel %vm368, %v400, 0.0
        %v433 = vsel %vm369, %v401, 0.0
        %v434 = vsel %vm370, %v402, 0.0
        %v435 = vsel %vm371, %v403, 0.0
        %v436 = vsel %vm372, %v404, 0.0
        %v437 = vsel %vm373, %v405, 0.0
        %v438 = vsel %vm374, %v406, 0.0
        %v439 = vsel %vm375, %v407, 0.0
        %v440 = vsel %vm376, %v408, 0.0
        %v441 = vsel %vm377, %v409, 0.0
        %v442 = vsel %vm378, %v410, 0.0
        %v443 = vsel %vm379, %v411, 0.0
        %v444 = vsel %vm380, %v412, 0.0
        %v445 = vsel %vm381, %v413, 0.0
        %v446 = vsel %vm382, %v414, 0.0
        %v447 = vsel %vm383, %v415, 0.0
        %v448 = vsel %vm384, %v416, 0.0
        %v449 = vsel %vm385, %v417, 0.0
        %v450 = vsel %vm386, %v418, 0.0
        %v451 = vsel %vm387, %v419, 0.0
        %v452 = vsel %vm388, %v420, 0.0
        %v453 = vsel %vm389, %v421, 0.0
        %v454 = vsel %vm390, %v422, 0.0
        %v455 = vsel %vm391, %v423, 0.0
        %v456 = vsel %vm392, %v424, 0.0
        %v457 = vsel %vm393, %v425, 0.0
        %v458 = vsel %vm394, %v426, 0.0
        %v459 = vsel %vm395, %v427, 0.0
        %v460 = vsel %vm396, %v428, 0.0
        %v461 = vsel %vm397, %v429, 0.0
        %v462 = vld [vmem:[#allocation2] sm:$0x1]
        %v463 = vadd.f32 %v430, %v431
        %v464 = vadd.f32 %v463, %v432
        %v465 = vadd.f32 %v464, %v433
        %v466 = vadd.f32 %v465, %v434
        %v467 = vadd.f32 %v466, %v435
        %v468 = vadd.f32 %v467, %v436
        %v469 = vadd.f32 %v468, %v437
        %v470 = vadd.f32 %v469, %v438
        %v471 = vadd.f32 %v470, %v439
        %v472 = vadd.f32 %v471, %v440
        %v473 = vadd.f32 %v472, %v441
        %v474 = vadd.f32 %v473, %v442
        %v475 = vadd.f32 %v474, %v443
        %v476 = vadd.f32 %v475, %v444
        %v477 = vadd.f32 %v476, %v445
        %v478 = vadd.f32 %v477, %v446
        %v479 = vadd.f32 %v478, %v447
        %v480 = vadd.f32 %v479, %v448
        %v481 = vadd.f32 %v480, %v449
        %v482 = vadd.f32 %v481, %v450
        %v483 = vadd.f32 %v482, %v451
        %v484 = vadd.f32 %v483, %v452
        %v485 = vadd.f32 %v484, %v453
        %v486 = vadd.f32 %v485, %v454
        %v487 = vadd.f32 %v486, %v455
        %v488 = vadd.f32 %v487, %v456
        %v489 = vadd.f32 %v488, %v457
        %v490 = vadd.f32 %v489, %v458
        %v491 = vadd.f32 %v490, %v459
        %v492 = vadd.f32 %v491, %v460
        %v493 = vadd.f32 %v492, %v461
        %v494 = vrot.slane %v493, 4
        %v495 = vadd.f32 %v493, %v494
        %v496 = vrot.slane %v495, 2
        %v497 = vadd.f32 %v495, %v496
        %v498 = vrot.slane %v497, 1
        %v499 = vadd.f32 %v497, %v498
        %v500 = vadd.f32 %v462, %v499
        %501 = vst [vmem:[#allocation2] sm:$0x1] %v500
      $region44: #{conv_block.3} parent=35 // pred_fallthru
        _
      %p502 = scmp.eq.s32.totalorder %s19, 1
      // Predicated region
      $region45: #{conv_block.3} parent=35 // pred_check
        %p503 = pneg %p502
      $region46: #{conv_block.3} parent=35 // pred_check_branch
        %505 = sbr.rel (%p503) target = $region48
      $region47: #{conv_block.3} parent=35 // pred_region
        %v506 = vld [vmem:[#allocation2] sm:$0x1]
        %v507 = vmul.f32 %v506, 0.001953125
        %v508 = vadd.f32 %v507, 1e-05
        %v509 = vrsqrt.pop %v508
        %v511 = vlaneseq
        %v512 = vshrl.u32 %v511, 7
        %v513 = vsub.s32 0, %v512
        %v514 = vrot.slane %v257, %v513
        %v516 = vsub.f32 %v225, %v514
        %v517 = vsub.f32 %v226, %v514
        %v518 = vsub.f32 %v227, %v514
        %v519 = vsub.f32 %v228, %v514
        %v520 = vsub.f32 %v229, %v514
        %v521 = vsub.f32 %v230, %v514
        %v522 = vsub.f32 %v231, %v514
        %v523 = vsub.f32 %v232, %v514
        %v524 = vsub.f32 %v233, %v514
        %v525 = vsub.f32 %v234, %v514
        %v526 = vsub.f32 %v235, %v514
        %v527 = vsub.f32 %v236, %v514
        %v528 = vsub.f32 %v237, %v514
        %v529 = vsub.f32 %v238, %v514
        %v530 = vsub.f32 %v239, %v514
        %v531 = vsub.f32 %v240, %v514
        %v532 = vsub.f32 %v241, %v514
        %v533 = vsub.f32 %v242, %v514
        %v534 = vsub.f32 %v243, %v514
        %v535 = vsub.f32 %v244, %v514
        %v536 = vsub.f32 %v245, %v514
        %v537 = vsub.f32 %v246, %v514
        %v538 = vsub.f32 %v247, %v514
        %v539 = vsub.f32 %v248, %v514
        %v540 = vsub.f32 %v249, %v514
        %v541 = vsub.f32 %v250, %v514
        %v542 = vsub.f32 %v251, %v514
        %v543 = vsub.f32 %v252, %v514
        %v544 = vsub.f32 %v253, %v514
        %v545 = vsub.f32 %v254, %v514
        %v546 = vsub.f32 %v255, %v514
        %v547 = vsub.f32 %v256, %v514
        %v548 = vld [vmem:[%s2] sm:$0x1]
        %v549 = vmul.f32 %v509, %v548
        %v551 = vlaneseq
        %v552 = vshrl.u32 %v551, 7
        %v553 = vsub.s32 0, %v552
        %v554 = vrot.slane %v549, %v553
        %v556 = vmul.f32 %v516, %v554
        %v557 = vmul.f32 %v517, %v554
        %v558 = vmul.f32 %v518, %v554
        %v559 = vmul.f32 %v519, %v554
        %v560 = vmul.f32 %v520, %v554
        %v561 = vmul.f32 %v521, %v554
        %v562 = vmul.f32 %v522, %v554
        %v563 = vmul.f32 %v523, %v554
        %v564 = vmul.f32 %v524, %v554
        %v565 = vmul.f32 %v525, %v554
        %v566 = vmul.f32 %v526, %v554
        %v567 = vmul.f32 %v527, %v554
        %v568 = vmul.f32 %v528, %v554
        %v569 = vmul.f32 %v529, %v554
        %v570 = vmul.f32 %v530, %v554
        %v571 = vmul.f32 %v531, %v554
        %v572 = vmul.f32 %v532, %v554
        %v573 = vmul.f32 %v533, %v554
        %v574 = vmul.f32 %v534, %v554
        %v575 = vmul.f32 %v535, %v554
        %v576 = vmul.f32 %v536, %v554
        %v577 = vmul.f32 %v537, %v554
        %v578 = vmul.f32 %v538, %v554
        %v579 = vmul.f32 %v539, %v554
        %v580 = vmul.f32 %v540, %v554
        %v581 = vmul.f32 %v541, %v554
        %v582 = vmul.f32 %v542, %v554
        %v583 = vmul.f32 %v543, %v554
        %v584 = vmul.f32 %v544, %v554
        %v585 = vmul.f32 %v545, %v554
        %v586 = vmul.f32 %v546, %v554
        %v587 = vmul.f32 %v547, %v554
        %v588 = vld [vmem:[%s3] sm:$0x1]
        %v590 = vlaneseq
        %v591 = vshrl.u32 %v590, 7
        %v592 = vsub.s32 0, %v591
        %v593 = vrot.slane %v588, %v592
        %v595 = vadd.f32 %v556, %v593
        %v596 = vadd.f32 %v557, %v593
        %v597 = vadd.f32 %v558, %v593
        %v598 = vadd.f32 %v559, %v593
        %v599 = vadd.f32 %v560, %v593
        %v600 = vadd.f32 %v561, %v593
        %v601 = vadd.f32 %v562, %v593
        %v602 = vadd.f32 %v563, %v593
        %v603 = vadd.f32 %v564, %v593
        %v604 = vadd.f32 %v565, %v593
        %v605 = vadd.f32 %v566, %v593
        %v606 = vadd.f32 %v567, %v593
        %v607 = vadd.f32 %v568, %v593
        %v608 = vadd.f32 %v569, %v593
        %v609 = vadd.f32 %v570, %v593
        %v610 = vadd.f32 %v571, %v593
        %v611 = vadd.f32 %v572, %v593
        %v612 = vadd.f32 %v573, %v593
        %v613 = vadd.f32 %v574, %v593
        %v614 = vadd.f32 %v575, %v593
        %v615 = vadd.f32 %v576, %v593
        %v616 = vadd.f32 %v577, %v593
        %v617 = vadd.f32 %v578, %v593
        %v618 = vadd.f32 %v579, %v593
        %v619 = vadd.f32 %v580, %v593
        %v620 = vadd.f32 %v581, %v593
        %v621 = vadd.f32 %v582, %v593
        %v622 = vadd.f32 %v583, %v593
        %v623 = vadd.f32 %v584, %v593
        %v624 = vadd.f32 %v585, %v593
        %v625 = vadd.f32 %v586, %v593
        %v626 = vadd.f32 %v587, %v593
        %v627 = vmax.f32 %v595, 0.0
        %v628 = vmax.f32 %v596, 0.0
        %v629 = vmax.f32 %v597, 0.0
        %v630 = vmax.f32 %v598, 0.0
        %v631 = vmax.f32 %v599, 0.0
        %v632 = vmax.f32 %v600, 0.0
        %v633 = vmax.f32 %v601, 0.0
        %v634 = vmax.f32 %v602, 0.0
        %v635 = vmax.f32 %v603, 0.0
        %v636 = vmax.f32 %v604, 0.0
        %v637 = vmax.f32 %v605, 0.0
        %v638 = vmax.f32 %v606, 0.0
        %v639 = vmax.f32 %v607, 0.0
        %v640 = vmax.f32 %v608, 0.0
        %v641 = vmax.f32 %v609, 0.0
        %v642 = vmax.f32 %v610, 0.0
        %v643 = vmax.f32 %v611, 0.0
        %v644 = vmax.f32 %v612, 0.0
        %v645 = vmax.f32 %v613, 0.0
        %v646 = vmax.f32 %v614, 0.0
        %v647 = vmax.f32 %v615, 0.0
        %v648 = vmax.f32 %v616, 0.0
        %v649 = vmax.f32 %v617, 0.0
        %v650 = vmax.f32 %v618, 0.0
        %v651 = vmax.f32 %v619, 0.0
        %v652 = vmax.f32 %v620, 0.0
        %v653 = vmax.f32 %v621, 0.0
        %v654 = vmax.f32 %v622, 0.0
        %v655 = vmax.f32 %v623, 0.0
        %v656 = vmax.f32 %v624, 0.0
        %v657 = vmax.f32 %v625, 0.0
        %v658 = vmax.f32 %v626, 0.0
        %659 = vst [vmem:[%s215] sm:$0xff] %v627
        %660 = vst [vmem:[%s215 + $0x8] sm:$0xff] %v628
        %661 = vst [vmem:[%s215 + $0x10] sm:$0xff] %v629
        %662 = vst [vmem:[%s215 + $0x18] sm:$0xff] %v630
        %663 = vst [vmem:[%s215 + $0x20] sm:$0xff] %v631
        %664 = vst [vmem:[%s215 + $0x28] sm:$0xff] %v632
        %665 = vst [vmem:[%s215 + $0x30] sm:$0xff] %v633
        %666 = vst [vmem:[%s215 + $0x38] sm:$0xff] %v634
        %667 = vst [vmem:[%s215 + $0x40] sm:$0xff] %v635
        %668 = vst [vmem:[%s215 + $0x48] sm:$0xff] %v636
        %669 = vst [vmem:[%s215 + $0x50] sm:$0xff] %v637
        %670 = vst [vmem:[%s215 + $0x58] sm:$0xff] %v638
        %671 = vst [vmem:[%s215 + $0x60] sm:$0xff] %v639
        %672 = vst [vmem:[%s215 + $0x68] sm:$0xff] %v640
        %673 = vst [vmem:[%s215 + $0x70] sm:$0xff] %v641
        %674 = vst [vmem:[%s215 + $0x78] sm:$0xff] %v642
        %675 = vst [vmem:[%s215 + $0x80] sm:$0xff] %v643
        %676 = vst [vmem:[%s215 + $0x88] sm:$0xff] %v644
        %677 = vst [vmem:[%s215 + $0x90] sm:$0xff] %v645
        %678 = vst [vmem:[%s215 + $0x98] sm:$0xff] %v646
        %679 = vst [vmem:[%s215 + $0xa0] sm:$0xff] %v647
        %680 = vst [vmem:[%s215 + $0xa8] sm:$0xff] %v648
        %681 = vst [vmem:[%s215 + $0xb0] sm:$0xff] %v649
        %682 = vst [vmem:[%s215 + $0xb8] sm:$0xff] %v650
        %683 = vst [vmem:[%s215 + $0xc0] sm:$0xff] %v651
        %684 = vst [vmem:[%s215 + $0xc8] sm:$0xff] %v652
        %685 = vst [vmem:[%s215 + $0xd0] sm:$0xff] %v653
        %686 = vst [vmem:[%s215 + $0xd8] sm:$0xff] %v654
        %687 = vst [vmem:[%s215 + $0xe0] sm:$0xff] %v655
        %688 = vst [vmem:[%s215 + $0xe8] sm:$0xff] %v656
        %689 = vst [vmem:[%s215 + $0xf0] sm:$0xff] %v657
        %690 = vst [vmem:[%s215 + $0xf8] sm:$0xff] %v658
      $region48: #{conv_block.3} parent=35 // pred_fallthru
        _
      %s691 = smul.u32 %s20, %s19
      %s692 = smul.u32 32, %s691
      %p693 = scmp.lt.s32.totalorder %s692, 63
      %s694 = scalar_select %p693, %s692, 63
      %s695 = smul.addr %s694, 8
      %s696 = scalar_lea.vmem %s4, %s695
      // Predicated region
      $region49: #{conv_block.3} parent=35 // pred_check
        %p697 = pneg %p136
      $region50: #{conv_block.3} parent=35 // pred_check_branch
        %699 = sbr.rel (%p697) target = $region52
      $region51: #{conv_block.3} parent=35 // pred_region
        %s700 = smul.u32 %s20, %s19
        %s701 = smul.u32 32, %s700
      $region52: #{conv_block.3} parent=35 // pred_fallthru
        _
    $region36: #{conv_block.3} parent=5 // pred_fallthru
      _
    %p702 = scmp.le.s32.totalorder 2, %s10
    // Predicated region
    $region53: #{conv_block.3} parent=5 // pred_check
      %p703 = pneg %p702
    $region54: #{conv_block.3} parent=5 // pred_check_branch
      %705 = sbr.rel (%p703) target = $region56
    $region55: #{conv_block.3} parent=5 // pred_region
      %s706 = ssub.s32 %s10, 2
      // Predicated region
      $region57: #{conv_block.3} parent=55 // pred_check
        %p707 = pneg %p142
      $region58: #{conv_block.3} parent=55 // pred_check_branch
        %709 = sbr.rel (%p707) target = $region60
      $region59: #{conv_block.3} parent=55 // pred_region
        %s710 = smul.u32 %s22, %s21
        %s711 = smul.u32 32, %s710
        %p712 = scmp.lt.s32.totalorder %s711, 63
        %s713 = scalar_select %p712, %s711, 63
        %s714 = smul.addr %s713, 8
        %s715 = scalar_lea.vmem %s4, %s714
      $region60: #{conv_block.3} parent=55 // pred_fallthru
        _
    $region56: #{conv_block.3} parent=5 // pred_fallthru
      _
  $region6: #{conv_block.3} parent=0 // loop_footer
    %s14 = sadd.s32 1, %s10
  $region7: #{conv_block.3} parent=0 // loop_footer_branch
    %9 = sbr.rel target = $region3
  $region8: #{conv_block.3} parent=0 // loop_exit
    _

</llo_original>
